<compile_context>
chip_gen: v7x
topology: tpu7x:2x2x1
jax: 0.10.0
libtpu: 0.0.40
codegen_flags: <defaults>
</compile_context>

<pallas_src>
import functools

import jax
import jax.numpy as jnp
from jax.experimental import pallas as pl
from jax.experimental.pallas import tpu as pltpu


def _round_up(v, m):
    return (v + m - 1) // m * m


@functools.cache
def _take_gather_supported(operand_cols, index_cols):
    """Ahead-of-time probe: can Mosaic lower a lane-axis take_along_axis gather with an
    (8, operand_cols) f32 operand and (8, index_cols) indices?  The probe is compiled once
    per shape pair and never executed; it replaces the old runtime try/except selection."""

    def probe(x_ref, i_ref, o_ref):
        idx = jnp.broadcast_to(i_ref[...], (8, index_cols))
        o_ref[...] = jnp.take_along_axis(x_ref[...], idx, axis=1)

    try:
        fn = pl.pallas_call(
            probe, out_shape=jax.ShapeDtypeStruct((8, index_cols), jnp.float32))
        jax.jit(fn).lower(
            jax.ShapeDtypeStruct((8, operand_cols), jnp.float32),
            jax.ShapeDtypeStruct((1, index_cols), jnp.int32),
        ).compile()
        return True
    except Exception:  # noqa: BLE001  any lowering/compile failure -> one-hot gather
        return False


def _make_mrconv_kernel(*, k_count, n_tile, n_tiles, np_full, matmul_dtype,
                        centers_are_self, gather_impl):
    def kernel(*refs):
        if centers_are_self:
            x_ref, idx_j_ref, wx_ref, wd_ref, o_ref = refs
            idx_i_ref = None
        else:
            x_ref, idx_i_ref, idx_j_ref, wx_ref, wd_ref, o_ref = refs

        # Full-width x (gather operand), upcast to f32 once per grid step.
        x_full = x_ref[0].astype(jnp.float32)                     # (Cp, NP)
        cp = x_full.shape[0]

        # Node tile of x for the x-half of the conv (and the self-center subtract).
        if n_tiles == 1:
            x_tile = x_full
        else:
            col0 = pl.multiple_of(pl.program_id(1) * n_tile, n_tile)
            x_tile = x_ref[0, :, pl.ds(col0, n_tile)].astype(jnp.float32)

        idx_j = idx_j_ref[0]                                      # (K, TN) int32
        idx_i = None if centers_are_self else idx_i_ref[0]

        if gather_impl == "take":
            def gather_cols(row):                                 # (1, TN) -> (Cp, TN)
                idx2d = jnp.broadcast_to(row, (cp, n_tile))
                return jnp.take_along_axis(x_full, idx2d, axis=1)

            def rel_feat(k):
                g_j = gather_cols(idx_j[k:k + 1, :])
                if centers_are_self:
                    return g_j
                return g_j - gather_cols(idx_i[k:k + 1, :])
        else:
            # Tiled one-hot/MXU gather: per k an (NP, TN) f32 selection matrix (exact,
            # values in {-1, 0, 1}); never a full (NP, NP) slab.  Iota hoisted out of K.
            m_iota = jax.lax.broadcasted_iota(jnp.int32, (np_full, n_tile), 0)

            def rel_feat(k):
                sel = (m_iota == idx_j[k:k + 1, :]).astype(jnp.float32)
                if not centers_are_self:
                    sel = sel - (m_iota == idx_i[k:k + 1, :]).astype(jnp.float32)
                return jnp.dot(x_full, sel, preferred_element_type=jnp.float32)

        # K innermost; accumulator tile stays in vregs; k = 0 peeled (no -inf fill).
        acc = rel_feat(0)
        for k in range(1, k_count):
            acc = jnp.maximum(acc, rel_feat(k))
        xj_max = acc - x_tile if centers_are_self else acc

        # Fused 1x1 conv as two MXU dots (f32 accumulate).  The bias rides in the
        # all-ones channel row of x_tile times the extra column of wx.
        out = jnp.dot(wx_ref[...], x_tile.astype(matmul_dtype),
                      preferred_element_type=jnp.float32)
        out = out + jnp.dot(wd_ref[...], xj_max.astype(matmul_dtype),
                            preferred_element_type=jnp.float32)
        o_ref[0] = jnp.maximum(out, 0.0).astype(o_ref.dtype)      # act='relu'
        # TODO(synk): BasicConv norm branch not implemented (module default norm=None).

    return kernel


def _mrconv2d_pallas(xs, idx_i, idx_j, wx, wd, *, n_tile, matmul_dtype,
                     centers_are_self, gather_impl):
    B, Cp, NP = xs.shape
    K = idx_j.shape[1]
    Coutp = wx.shape[0]
    n_tiles = NP // n_tile

    x_bytes = jnp.dtype(xs.dtype).itemsize
    w_bytes = jnp.dtype(wx.dtype).itemsize

    # Single-buffer the resident x block when it is large: it is only re-fetched on batch
    # changes, so this costs ~nothing and halves its VMEM footprint (v7x: 64 MiB physical).
    x_block_bytes = Cp * NP * x_bytes
    x_single_buf = x_block_bytes > (8 << 20)
    x_spec_kw = {"pipeline_mode": pl.Buffered(1)} if x_single_buf else {}

    # Scoped-VMEM budget from the actual block sizes (plus in-kernel temporaries).
    n_idx = 1 if centers_are_self else 2
    est = x_block_bytes * (1 if x_single_buf else 2)      # x block(s)
    est += Cp * NP * 4                                    # in-kernel f32 copy of x
    est += n_idx * K * n_tile * 4 * 2                     # idx blocks (double buffered)
    est += 2 * Coutp * Cp * w_bytes * 2                   # wx, wd
    est += Coutp * n_tile * 4 * 2                         # output block (double buffered)
    est += (4 * Cp * n_tile + 2 * Coutp * n_tile) * 4     # acc / diff / x_tile / out temps
    if gather_impl != "take":
        est += 3 * NP * n_tile * 4                        # one-hot + iota temporaries
    vmem_limit = min(max(32 << 20, int(est * 1.5)), 64 << 20)

    in_specs = [pl.BlockSpec((1, Cp, NP), lambda b, t: (b, 0, 0), **x_spec_kw)]
    args = [xs]
    if not centers_are_self:
        in_specs.append(pl.BlockSpec((1, K, n_tile), lambda b, t: (b, 0, t)))
        args.append(idx_i)
    in_specs.append(pl.BlockSpec((1, K, n_tile), lambda b, t: (b, 0, t)))
    args.append(idx_j)
    in_specs += [pl.BlockSpec((Coutp, Cp), lambda b, t: (0, 0)),
                 pl.BlockSpec((Coutp, Cp), lambda b, t: (0, 0))]
    args += [wx, wd]

    kernel = _make_mrconv_kernel(
        k_count=K, n_tile=n_tile, n_tiles=n_tiles, np_full=NP,
        matmul_dtype=matmul_dtype, centers_are_self=centers_are_self,
        gather_impl=gather_impl)

    return pl.pallas_call(
        kernel,
        out_shape=jax.ShapeDtypeStruct((B, Coutp, NP), jnp.float32),
        grid_spec=pltpu.PrefetchScalarGridSpec(
            num_scalar_prefetch=0,
            grid=(B, n_tiles),                            # batch outer, node tiles inner
            in_specs=in_specs,
            out_specs=pl.BlockSpec((1, Coutp, n_tile), lambda b, t: (b, 0, t)),
        ),
        compiler_params=pltpu.CompilerParams(
            dimension_semantics=("parallel", "parallel"),
            vmem_limit_bytes=vmem_limit),
    )(*args)


def mrconv2d(x, edge_index, weight, bias, *, matmul_dtype=jnp.bfloat16,
             x_dtype=jnp.bfloat16, centers_are_self=False, node_tile=512,
             gather_impl="auto"):
    """MRConv2d forward (GraphConv2d 'mr' branch).

    x:          (B, C, N, 1) float              node features
    edge_index: (2, B, N, K) int                [0] = neighbors, [1] = centers
    weight:     (Cout, 2C)                      1x1 Conv2d weight, PyTorch interleaved
                                                channel order [x_0, xj_0, x_1, xj_1, ...]
    bias:       (Cout,)
    matmul_dtype:     MXU operand dtype for the conv (bf16 = native MXU rate).  For
                      training / tight numerics pass jnp.float32 (with x_dtype=float32).
    x_dtype:          HBM storage dtype of x inside the kernel (bf16 halves the dominant
                      HBM read; float32 for exactness).
    centers_are_self: True when edge_index[1][b, n, k] == n (usual ViG case); the idx_i
                      stream is then neither DMA'd nor gathered.
    node_tile:        lane-tile size for the node axis (multiple of 128); None disables
                      node tiling (always-safe gather shapes).
    gather_impl:      "auto" | "take" | "onehot".
    """
    B, C, N, one = x.shape
    assert one == 1, "dense graph data type expects trailing spatial dim == 1"
    Cout, twoC = weight.shape
    assert twoC == 2 * C
    K = edge_index.shape[-1]
    assert K >= 1, "K == 0 would propagate garbage through the max-relative feature"

    # Channel padding: +1 all-ones row carries the folded conv bias; round to sublanes.
    Cp = _round_up(C + 1, 8)
    Coutp = _round_up(Cout, 8)

    NP0 = _round_up(max(N, 128), 128)
    if node_tile is None or node_tile >= NP0:
        TN, NP = NP0, NP0
    else:
        TN = _round_up(node_tile, 128)
        NP = _round_up(NP0, TN)

    if gather_impl == "auto":
        gather_impl = "take" if _take_gather_supported(NP, TN) else "onehot"

    xs = jnp.pad(x[..., 0].astype(jnp.float32),
                 ((0, 0), (0, Cp - C), (0, NP - N)))              # (B, Cp, NP)
    xs = xs.at[:, C, :].set(1.0)                                  # ones row -> folded bias
    xs = xs.astype(x_dtype)

    # Node axis on lanes: (B, N, K) -> (B, K, NP).  Padded node slots gather node 0
    # (always in-bounds); their output columns are sliced away below.
    def prep_idx(e):
        e = jnp.transpose(e.astype(jnp.int32), (0, 2, 1))
        return jnp.pad(e, ((0, 0), (0, 0), (0, NP - N)))

    idx_j = prep_idx(edge_index[0])
    idx_i = None if centers_are_self else prep_idx(edge_index[1])

    # PyTorch's cat+reshape interleaves channels [x_0, xj_0, x_1, xj_1, ...]; split the
    # conv weight into x / xj halves and fold the bias into an extra x-half column.
    w_x = weight[:, 0::2].astype(jnp.float32)
    w_d = weight[:, 1::2].astype(jnp.float32)
    wx = jnp.zeros((Coutp, Cp), jnp.float32).at[:Cout, :C].set(w_x)
    wx = wx.at[:Cout, C].set(bias.astype(jnp.float32))
    wd = jnp.zeros((Coutp, Cp), jnp.float32).at[:Cout, :C].set(w_d)
    wx = wx.astype(matmul_dtype)
    wd = wd.astype(matmul_dtype)

    out = _mrconv2d_pallas(xs, idx_i, idx_j, wx, wd, n_tile=TN,
                           matmul_dtype=matmul_dtype,
                           centers_are_self=centers_are_self,
                           gather_impl=gather_impl)
    return out[:, :Cout, :N, None]                                # (B, Cout, N, 1)


def mrconv2d_ref(x, edge_index, weight, bias):
    """Pure-JAX reference mirroring the PyTorch MRConv2d forward."""
    xs = x[..., 0]                                                # (B, C, N)
    gather = jax.vmap(lambda xb, ib: xb[:, ib])                   # (C,N),(N,K)->(C,N,K)
    x_i = gather(xs, edge_index[1])
    x_j = gather(xs, edge_index[0])
    xj_max = jnp.max(x_j - x_i, axis=-1)                          # (B, C, N)
    B, C, N = xs.shape
    feat = jnp.stack([xs, xj_max], axis=2).reshape(B, 2 * C, N)
    out = jnp.einsum('oc,bcn->bon', weight, feat,
                     precision='highest') + bias[None, :, None]
    return jax.nn.relu(out)[..., None]


if __name__ == "__main__":
    B, C, N, K = 2, 4, 16, 8          # in_channels=4
    Cout = 8                          # out_channels=8

    key = jax.random.PRNGKey(0)
    kx, ki, kj, kw, kb = jax.random.split(key, 5)

    x = jax.random.normal(kx, (B, C, N, 1), dtype=jnp.float32)
    nbrs = jax.random.randint(kj, (B, N, K), 0, N, dtype=jnp.int32)   # edge_index[0]
    ctrs = jax.random.randint(ki, (B, N, K), 0, N, dtype=jnp.int32)   # edge_index[1]
    edge_index = jnp.stack([nbrs, ctrs], axis=0)                      # (2, B, N, K)

    # Deterministic synthetic Conv2d(2C, Cout, 1, bias=True) parameters.
    fan_in = 2 * C
    weight = jax.random.normal(kw, (Cout, 2 * C), dtype=jnp.float32) / jnp.sqrt(fan_in)
    bias = jax.random.normal(kb, (Cout,), dtype=jnp.float32) * 0.1

    ref = mrconv2d_ref(x, edge_index, weight, bias)

    # Default inference path (bf16 x storage + bf16 MXU operands) -- relaxed tolerance.
    out_bf16 = jax.block_until_ready(mrconv2d(x, edge_index, weight, bias))
    assert out_bf16.shape == (B, Cout, N, 1), out_bf16.shape
    assert jnp.allclose(out_bf16, ref, atol=1e-1, rtol=1e-1), \
        float(jnp.max(jnp.abs(out_bf16 - ref)))

    # Full f32 path -- tight tolerance.
    out_f32 = jax.block_until_ready(
        mrconv2d(x, edge_index, weight, bias,
                 matmul_dtype=jnp.float32, x_dtype=jnp.float32))
    assert jnp.allclose(out_f32, ref, atol=1e-5, rtol=1e-5), \
        float(jnp.max(jnp.abs(out_f32 - ref)))

    # Tiled one-hot/MXU gather path (exact selection), f32 -- tight tolerance.
    out_oh = jax.block_until_ready(
        mrconv2d(x, edge_index, weight, bias, gather_impl="onehot",
                 matmul_dtype=jnp.float32, x_dtype=jnp.float32))
    assert jnp.allclose(out_oh, ref, atol=1e-5, rtol=1e-5), \
        float(jnp.max(jnp.abs(out_oh - ref)))

    # ViG-style self-center edges (edge_index[1][b, n, k] == n): idx_i stream dropped.
    edge_self = jnp.stack(
        [nbrs, jnp.broadcast_to(jnp.arange(N, dtype=jnp.int32)[None, :, None],
                                (B, N, K))], axis=0)
    ref_self = mrconv2d_ref(x, edge_self, weight, bias)

    out_self = jax.block_until_ready(
        mrconv2d(x, edge_self, weight, bias, centers_are_self=True))
    assert jnp.allclose(out_self, ref_self, atol=1e-1, rtol=1e-1), \
        float(jnp.max(jnp.abs(out_self - ref_self)))

    out_self_f32 = jax.block_until_ready(
        mrconv2d(x, edge_self, weight, bias, centers_are_self=True,
                 matmul_dtype=jnp.float32, x_dtype=jnp.float32))
    assert jnp.allclose(out_self_f32, ref_self, atol=1e-5, rtol=1e-5), \
        float(jnp.max(jnp.abs(out_self_f32 - ref_self)))

    print("KERNEL_OK")
</pallas_src>

<mosaic_0001>
module attributes {stable_mosaic.version = 11 : i64} {
  func.func @kernel(%arg0: i32, %arg1: i32, %arg2: memref<1x8x128xbf16, #tpu.memory_space<vmem>>, %arg3: memref<1x8x128xi32, #tpu.memory_space<vmem>>, %arg4: memref<1x8x128xi32, #tpu.memory_space<vmem>>, %arg5: memref<8x8xbf16, #tpu.memory_space<vmem>>, %arg6: memref<8x8xbf16, #tpu.memory_space<vmem>>, %arg7: memref<1x8x128xf32, #tpu.memory_space<vmem>>) attributes {dimension_semantics = [#tpu.dimension_semantics<parallel>, #tpu.dimension_semantics<parallel>], iteration_bounds = array<i64: 2, 1>, scalar_prefetch = 0 : i64, scratch_operands = 0 : i64, tpu.core_type = #tpu.core_type<tc>, window_params = [{transform_indices = @transform_0, window_bounds = array<i64: 1, 8, 128>}, {transform_indices = @transform_1, window_bounds = array<i64: 1, 8, 128>}, {transform_indices = @transform_2, window_bounds = array<i64: 1, 8, 128>}, {pipeline_mode = #tpu.pipeline_mode<synchronous>, transform_indices = @transform_3, window_bounds = array<i64: 8, 8>}, {pipeline_mode = #tpu.pipeline_mode<synchronous>, transform_indices = @transform_4, window_bounds = array<i64: 8, 8>}, {transform_indices = @transform_5, window_bounds = array<i64: 1, 8, 128>}]} {
    %c0 = arith.constant 0 : index
    %c0_0 = arith.constant 0 : index
    %c0_1 = arith.constant 0 : index
    %0 = vector.load %arg2[%c0, %c0_0, %c0_1] : memref<1x8x128xbf16, #tpu.memory_space<vmem>>, vector<1x8x128xbf16>
    %1 = vector.shape_cast %0 : vector<1x8x128xbf16> to vector<8x128xbf16>
    %2 = arith.extf %1 : vector<8x128xbf16> to vector<8x128xf32>
    %c0_2 = arith.constant 0 : index
    %c0_3 = arith.constant 0 : index
    %c0_4 = arith.constant 0 : index
    %3 = vector.load %arg4[%c0_2, %c0_3, %c0_4] : memref<1x8x128xi32, #tpu.memory_space<vmem>>, vector<1x8x128xi32>
    %4 = vector.shape_cast %3 : vector<1x8x128xi32> to vector<8x128xi32>
    %c0_5 = arith.constant 0 : index
    %c0_6 = arith.constant 0 : index
    %c0_7 = arith.constant 0 : index
    %5 = vector.load %arg3[%c0_5, %c0_6, %c0_7] : memref<1x8x128xi32, #tpu.memory_space<vmem>>, vector<1x8x128xi32>
    %6 = vector.shape_cast %5 : vector<1x8x128xi32> to vector<8x128xi32>
    %7 = tpu.iota {dimensions = array<i32: 0>} : vector<128x128xi32>
    %8 = vector.extract_strided_slice %4 {offsets = [0, 0], sizes = [1, 128], strides = [1, 1]} : vector<8x128xi32> to vector<1x128xi32>
    %9 = vector.broadcast %8 : vector<1x128xi32> to vector<128x128xi32>
    %10 = arith.cmpi eq, %7, %9 : vector<128x128xi32>
    %11 = arith.extui %10 : vector<128x128xi1> to vector<128x128xi32>
    %12 = arith.sitofp %11 : vector<128x128xi32> to vector<128x128xf32>
    %13 = vector.extract_strided_slice %6 {offsets = [0, 0], sizes = [1, 128], strides = [1, 1]} : vector<8x128xi32> to vector<1x128xi32>
    %14 = vector.broadcast %13 : vector<1x128xi32> to vector<128x128xi32>
    %15 = arith.cmpi eq, %7, %14 : vector<128x128xi32>
    %16 = arith.extui %15 : vector<128x128xi1> to vector<128x128xi32>
    %17 = arith.sitofp %16 : vector<128x128xi32> to vector<128x128xf32>
    %18 = arith.subf %12, %17 : vector<128x128xf32>
    %cst = arith.constant dense<0.000000e+00> : vector<8x128xf32>
    %19 = tpu.matmul %2, %18, %cst {dimension_numbers = #tpu.dot_dimension_numbers<[1], [0], [0], [1], [0, 0, 1, 1], [], []>} : vector<8x128xf32>, vector<128x128xf32>, vector<8x128xf32> -> vector<8x128xf32>
    %20 = vector.extract_strided_slice %4 {offsets = [1, 0], sizes = [1, 128], strides = [1, 1]} : vector<8x128xi32> to vector<1x128xi32>
    %21 = vector.broadcast %20 : vector<1x128xi32> to vector<128x128xi32>
    %22 = arith.cmpi eq, %7, %21 : vector<128x128xi32>
    %23 = arith.extui %22 : vector<128x128xi1> to vector<128x128xi32>
    %24 = arith.sitofp %23 : vector<128x128xi32> to vector<128x128xf32>
    %25 = vector.extract_strided_slice %6 {offsets = [1, 0], sizes = [1, 128], strides = [1, 1]} : vector<8x128xi32> to vector<1x128xi32>
    %26 = vector.broadcast %25 : vector<1x128xi32> to vector<128x128xi32>
    %27 = arith.cmpi eq, %7, %26 : vector<128x128xi32>
    %28 = arith.extui %27 : vector<128x128xi1> to vector<128x128xi32>
    %29 = arith.sitofp %28 : vector<128x128xi32> to vector<128x128xf32>
    %30 = arith.subf %24, %29 : vector<128x128xf32>
    %cst_8 = arith.constant dense<0.000000e+00> : vector<8x128xf32>
    %31 = tpu.matmul %2, %30, %cst_8 {dimension_numbers = #tpu.dot_dimension_numbers<[1], [0], [0], [1], [0, 0, 1, 1], [], []>} : vector<8x128xf32>, vector<128x128xf32>, vector<8x128xf32> -> vector<8x128xf32>
    %32 = arith.maximumf %19, %31 : vector<8x128xf32>
    %33 = vector.extract_strided_slice %4 {offsets = [2, 0], sizes = [1, 128], strides = [1, 1]} : vector<8x128xi32> to vector<1x128xi32>
    %34 = vector.broadcast %33 : vector<1x128xi32> to vector<128x128xi32>
    %35 = arith.cmpi eq, %7, %34 : vector<128x128xi32>
    %36 = arith.extui %35 : vector<128x128xi1> to vector<128x128xi32>
    %37 = arith.sitofp %36 : vector<128x128xi32> to vector<128x128xf32>
    %38 = vector.extract_strided_slice %6 {offsets = [2, 0], sizes = [1, 128], strides = [1, 1]} : vector<8x128xi32> to vector<1x128xi32>
    %39 = vector.broadcast %38 : vector<1x128xi32> to vector<128x128xi32>
    %40 = arith.cmpi eq, %7, %39 : vector<128x128xi32>
    %41 = arith.extui %40 : vector<128x128xi1> to vector<128x128xi32>
    %42 = arith.sitofp %41 : vector<128x128xi32> to vector<128x128xf32>
    %43 = arith.subf %37, %42 : vector<128x128xf32>
    %cst_9 = arith.constant dense<0.000000e+00> : vector<8x128xf32>
    %44 = tpu.matmul %2, %43, %cst_9 {dimension_numbers = #tpu.dot_dimension_numbers<[1], [0], [0], [1], [0, 0, 1, 1], [], []>} : vector<8x128xf32>, vector<128x128xf32>, vector<8x128xf32> -> vector<8x128xf32>
    %45 = arith.maximumf %32, %44 : vector<8x128xf32>
    %46 = vector.extract_strided_slice %4 {offsets = [3, 0], sizes = [1, 128], strides = [1, 1]} : vector<8x128xi32> to vector<1x128xi32>
    %47 = vector.broadcast %46 : vector<1x128xi32> to vector<128x128xi32>
    %48 = arith.cmpi eq, %7, %47 : vector<128x128xi32>
    %49 = arith.extui %48 : vector<128x128xi1> to vector<128x128xi32>
    %50 = arith.sitofp %49 : vector<128x128xi32> to vector<128x128xf32>
    %51 = vector.extract_strided_slice %6 {offsets = [3, 0], sizes = [1, 128], strides = [1, 1]} : vector<8x128xi32> to vector<1x128xi32>
    %52 = vector.broadcast %51 : vector<1x128xi32> to vector<128x128xi32>
    %53 = arith.cmpi eq, %7, %52 : vector<128x128xi32>
    %54 = arith.extui %53 : vector<128x128xi1> to vector<128x128xi32>
    %55 = arith.sitofp %54 : vector<128x128xi32> to vector<128x128xf32>
    %56 = arith.subf %50, %55 : vector<128x128xf32>
    %cst_10 = arith.constant dense<0.000000e+00> : vector<8x128xf32>
    %57 = tpu.matmul %2, %56, %cst_10 {dimension_numbers = #tpu.dot_dimension_numbers<[1], [0], [0], [1], [0, 0, 1, 1], [], []>} : vector<8x128xf32>, vector<128x128xf32>, vector<8x128xf32> -> vector<8x128xf32>
    %58 = arith.maximumf %45, %57 : vector<8x128xf32>
    %59 = vector.extract_strided_slice %4 {offsets = [4, 0], sizes = [1, 128], strides = [1, 1]} : vector<8x128xi32> to vector<1x128xi32>
    %60 = vector.broadcast %59 : vector<1x128xi32> to vector<128x128xi32>
    %61 = arith.cmpi eq, %7, %60 : vector<128x128xi32>
    %62 = arith.extui %61 : vector<128x128xi1> to vector<128x128xi32>
    %63 = arith.sitofp %62 : vector<128x128xi32> to vector<128x128xf32>
    %64 = vector.extract_strided_slice %6 {offsets = [4, 0], sizes = [1, 128], strides = [1, 1]} : vector<8x128xi32> to vector<1x128xi32>
    %65 = vector.broadcast %64 : vector<1x128xi32> to vector<128x128xi32>
    %66 = arith.cmpi eq, %7, %65 : vector<128x128xi32>
    %67 = arith.extui %66 : vector<128x128xi1> to vector<128x128xi32>
    %68 = arith.sitofp %67 : vector<128x128xi32> to vector<128x128xf32>
    %69 = arith.subf %63, %68 : vector<128x128xf32>
    %cst_11 = arith.constant dense<0.000000e+00> : vector<8x128xf32>
    %70 = tpu.matmul %2, %69, %cst_11 {dimension_numbers = #tpu.dot_dimension_numbers<[1], [0], [0], [1], [0, 0, 1, 1], [], []>} : vector<8x128xf32>, vector<128x128xf32>, vector<8x128xf32> -> vector<8x128xf32>
    %71 = arith.maximumf %58, %70 : vector<8x128xf32>
    %72 = vector.extract_strided_slice %4 {offsets = [5, 0], sizes = [1, 128], strides = [1, 1]} : vector<8x128xi32> to vector<1x128xi32>
    %73 = vector.broadcast %72 : vector<1x128xi32> to vector<128x128xi32>
    %74 = arith.cmpi eq, %7, %73 : vector<128x128xi32>
    %75 = arith.extui %74 : vector<128x128xi1> to vector<128x128xi32>
    %76 = arith.sitofp %75 : vector<128x128xi32> to vector<128x128xf32>
    %77 = vector.extract_strided_slice %6 {offsets = [5, 0], sizes = [1, 128], strides = [1, 1]} : vector<8x128xi32> to vector<1x128xi32>
    %78 = vector.broadcast %77 : vector<1x128xi32> to vector<128x128xi32>
    %79 = arith.cmpi eq, %7, %78 : vector<128x128xi32>
    %80 = arith.extui %79 : vector<128x128xi1> to vector<128x128xi32>
    %81 = arith.sitofp %80 : vector<128x128xi32> to vector<128x128xf32>
    %82 = arith.subf %76, %81 : vector<128x128xf32>
    %cst_12 = arith.constant dense<0.000000e+00> : vector<8x128xf32>
    %83 = tpu.matmul %2, %82, %cst_12 {dimension_numbers = #tpu.dot_dimension_numbers<[1], [0], [0], [1], [0, 0, 1, 1], [], []>} : vector<8x128xf32>, vector<128x128xf32>, vector<8x128xf32> -> vector<8x128xf32>
    %84 = arith.maximumf %71, %83 : vector<8x128xf32>
    %85 = vector.extract_strided_slice %4 {offsets = [6, 0], sizes = [1, 128], strides = [1, 1]} : vector<8x128xi32> to vector<1x128xi32>
    %86 = vector.broadcast %85 : vector<1x128xi32> to vector<128x128xi32>
    %87 = arith.cmpi eq, %7, %86 : vector<128x128xi32>
    %88 = arith.extui %87 : vector<128x128xi1> to vector<128x128xi32>
    %89 = arith.sitofp %88 : vector<128x128xi32> to vector<128x128xf32>
    %90 = vector.extract_strided_slice %6 {offsets = [6, 0], sizes = [1, 128], strides = [1, 1]} : vector<8x128xi32> to vector<1x128xi32>
    %91 = vector.broadcast %90 : vector<1x128xi32> to vector<128x128xi32>
    %92 = arith.cmpi eq, %7, %91 : vector<128x128xi32>
    %93 = arith.extui %92 : vector<128x128xi1> to vector<128x128xi32>
    %94 = arith.sitofp %93 : vector<128x128xi32> to vector<128x128xf32>
    %95 = arith.subf %89, %94 : vector<128x128xf32>
    %cst_13 = arith.constant dense<0.000000e+00> : vector<8x128xf32>
    %96 = tpu.matmul %2, %95, %cst_13 {dimension_numbers = #tpu.dot_dimension_numbers<[1], [0], [0], [1], [0, 0, 1, 1], [], []>} : vector<8x128xf32>, vector<128x128xf32>, vector<8x128xf32> -> vector<8x128xf32>
    %97 = arith.maximumf %84, %96 : vector<8x128xf32>
    %98 = vector.extract_strided_slice %4 {offsets = [7, 0], sizes = [1, 128], strides = [1, 1]} : vector<8x128xi32> to vector<1x128xi32>
    %99 = vector.broadcast %98 : vector<1x128xi32> to vector<128x128xi32>
    %100 = arith.cmpi eq, %7, %99 : vector<128x128xi32>
    %101 = arith.extui %100 : vector<128x128xi1> to vector<128x128xi32>
    %102 = arith.sitofp %101 : vector<128x128xi32> to vector<128x128xf32>
    %103 = vector.extract_strided_slice %6 {offsets = [7, 0], sizes = [1, 128], strides = [1, 1]} : vector<8x128xi32> to vector<1x128xi32>
    %104 = vector.broadcast %103 : vector<1x128xi32> to vector<128x128xi32>
    %105 = arith.cmpi eq, %7, %104 : vector<128x128xi32>
    %106 = arith.extui %105 : vector<128x128xi1> to vector<128x128xi32>
    %107 = arith.sitofp %106 : vector<128x128xi32> to vector<128x128xf32>
    %108 = arith.subf %102, %107 : vector<128x128xf32>
    %cst_14 = arith.constant dense<0.000000e+00> : vector<8x128xf32>
    %109 = tpu.matmul %2, %108, %cst_14 {dimension_numbers = #tpu.dot_dimension_numbers<[1], [0], [0], [1], [0, 0, 1, 1], [], []>} : vector<8x128xf32>, vector<128x128xf32>, vector<8x128xf32> -> vector<8x128xf32>
    %110 = arith.maximumf %97, %109 : vector<8x128xf32>
    %c0_15 = arith.constant 0 : index
    %c0_16 = arith.constant 0 : index
    %111 = vector.load %arg5[%c0_15, %c0_16] : memref<8x8xbf16, #tpu.memory_space<vmem>>, vector<8x8xbf16>
    %112 = arith.truncf %2 : vector<8x128xf32> to vector<8x128xbf16>
    %cst_17 = arith.constant dense<0.000000e+00> : vector<8x128xf32>
    %113 = tpu.matmul %111, %112, %cst_17 {dimension_numbers = #tpu.dot_dimension_numbers<[1], [0], [0], [1], [0, 0, 1, 1], [], []>} : vector<8x8xbf16>, vector<8x128xbf16>, vector<8x128xf32> -> vector<8x128xf32>
    %c0_18 = arith.constant 0 : index
    %c0_19 = arith.constant 0 : index
    %114 = vector.load %arg6[%c0_18, %c0_19] : memref<8x8xbf16, #tpu.memory_space<vmem>>, vector<8x8xbf16>
    %115 = arith.truncf %110 : vector<8x128xf32> to vector<8x128xbf16>
    %cst_20 = arith.constant dense<0.000000e+00> : vector<8x128xf32>
    %116 = tpu.matmul %114, %115, %cst_20 {dimension_numbers = #tpu.dot_dimension_numbers<[1], [0], [0], [1], [0, 0, 1, 1], [], []>} : vector<8x8xbf16>, vector<8x128xbf16>, vector<8x128xf32> -> vector<8x128xf32>
    %117 = arith.addf %113, %116 : vector<8x128xf32>
    %cst_21 = arith.constant 0.000000e+00 : f32
    %118 = vector.broadcast %cst_21 : f32 to vector<8x128xf32>
    %119 = arith.maximumf %117, %118 : vector<8x128xf32>
    %c0_22 = arith.constant 0 : index
    %c0_23 = arith.constant 0 : index
    %c0_24 = arith.constant 0 : index
    %120 = vector.load %arg7[%c0_22, %c0_23, %c0_24] : memref<1x8x128xf32, #tpu.memory_space<vmem>>, vector<1x8x128xf32>
    %121 = vector.shape_cast %120 : vector<1x8x128xf32> to vector<8x128xf32>
    %122 = vector.shape_cast %119 : vector<8x128xf32> to vector<1x8x128xf32>
    tpu.vector_store %arg7[%c0_22, %c0_23, %c0_24], %122 {strides = array<i32>} : memref<1x8x128xf32, #tpu.memory_space<vmem>>, vector<1x8x128xf32>,
    return
  }
  func.func @transform_0(%arg0: i32, %arg1: i32) -> (i32, i32, i32) {
    %c0_i32 = arith.constant 0 : i32
    %c0_i32_0 = arith.constant 0 : i32
    %c0_i32_1 = arith.constant 0 : i32
    return %arg0, %c0_i32, %c0_i32_0 : i32, i32, i32
  }
  func.func @transform_1(%arg0: i32, %arg1: i32) -> (i32, i32, i32) {
    %c0_i32 = arith.constant 0 : i32
    %c0_i32_0 = arith.constant 0 : i32
    return %arg0, %c0_i32, %arg1 : i32, i32, i32
  }
  func.func @transform_2(%arg0: i32, %arg1: i32) -> (i32, i32, i32) {
    %c0_i32 = arith.constant 0 : i32
    %c0_i32_0 = arith.constant 0 : i32
    return %arg0, %c0_i32, %arg1 : i32, i32, i32
  }
  func.func @transform_3(%arg0: i32, %arg1: i32) -> (i32, i32) {
    %c0_i32 = arith.constant 0 : i32
    %c0_i32_0 = arith.constant 0 : i32
    %c0_i32_1 = arith.constant 0 : i32
    return %c0_i32, %c0_i32_0 : i32, i32
  }
  func.func @transform_4(%arg0: i32, %arg1: i32) -> (i32, i32) {
    %c0_i32 = arith.constant 0 : i32
    %c0_i32_0 = arith.constant 0 : i32
    %c0_i32_1 = arith.constant 0 : i32
    return %c0_i32, %c0_i32_0 : i32, i32
  }
  func.func @transform_5(%arg0: i32, %arg1: i32) -> (i32, i32, i32) {
    %c0_i32 = arith.constant 0 : i32
    %c0_i32_0 = arith.constant 0 : i32
    return %arg0, %c0_i32, %arg1 : i32, i32, i32
  }
}

</mosaic_0001>

<llo_original>
// kernel: tpu_custom_call.1
$region0: #{tpu_custom_call.1}
  #allocation0 [shape = 'u32[]', space=smem, size = 0x4, offset = 0x4, fixed_abs, tag = 'smem constant byte address 0x4 - core index']
  #allocation1 [shape = 'u32[144,128]{1,0:T(1,128)}', space=vmem, size = 0x12000, scoped, tag = 'internal scratch']
  %s0 = inlined_call_operand.hbm [shape: bf16[2,8,128], index: 0, kind: input, shape index: {}]
  %s1 = inlined_call_operand.hbm [shape: s32[2,8,128], index: 1, kind: input, shape index: {}]
  %s2 = inlined_call_operand.hbm [shape: s32[2,8,128], index: 2, kind: input, shape index: {}]
  %s3 = inlined_call_operand.vmem [shape: bf16[8,8], index: 3, kind: input, shape index: {}]
  %s4 = inlined_call_operand.vmem [shape: bf16[8,8], index: 4, kind: input, shape index: {}]
  %s5 = inlined_call_operand.hbm [shape: f32[2,8,128], index: 5, kind: output, shape index: {}]
  %s6 = sld [smem:[#allocation0]]
  $region65: #{tpu_custom_call.1} parent=0
    _
  %s8 = ssub.s32 1, %s6
  %s9 = scalar_select 0, %s8, %s6
  $region1: #{tpu_custom_call.1} parent=0
    #allocation2 [shape = 'u8[4096]{0}', space=vmem, size = 0x1000, scoped, tag = 'input window, operand 0']
    #allocation3 [shape = 's32[2]{0}', space=sflag, size = 0x8, scoped, tag = 'scoped memory for tpu_custom_call.1']
    #allocation4 [shape = 's32[2]{0}', space=sflag, size = 0x8, scoped, tag = 'scoped memory for tpu_custom_call.1']
    #allocation5 [shape = 'u8[8192]{0}', space=vmem, size = 0x2000, scoped, tag = 'input window, operand 1']
    #allocation6 [shape = 's32[2]{0}', space=sflag, size = 0x8, scoped, tag = 'scoped memory for tpu_custom_call.1']
    #allocation7 [shape = 'u8[8192]{0}', space=vmem, size = 0x2000, scoped, tag = 'input window, operand 2']
    #allocation8 [shape = 'u8[8192]{0}', space=vmem, size = 0x2000, scoped, tag = 'output window, operand 0']
    %10 = vsyncpa [#allocation3], 0
    %s11 = scalar_lea.sflag [#allocation3], 1
    %12 = vsyncpa %s11, 0
    %13 = vsyncpa [#allocation6], 0
    %s14 = scalar_lea.sflag [#allocation6], 1
    %15 = vsyncpa %s14, 0
    %16 = vsyncpa [#allocation4], 0
    %s17 = scalar_lea.sflag [#allocation4], 1
    %18 = vsyncpa %s17, 0
    loop: start=0, step=1, limit=4
    $region2: #{tpu_custom_call.1} parent=1 // loop_pre_header
      _
    $region3: #{tpu_custom_call.1} parent=1 // loop_header
      %s20 = sphi 0, %s24
      %p21 = scmp.ge.s32.totalorder %s20, 4
      %s27 = sphi 0, %s39
      %s28 = sphi 0, %s35
      %s29 = sphi 0, %s27
      %s30 = sphi 0, %s28
      %s31 = sphi 0, %s29
      %s32 = sphi 0, %s30
      %s42 = sphi 0, %s44
      %s45 = sphi 0, %s42
      %s46 = sphi 0, %s45
      %s62 = sphi 0, %s46
      %s70 = sphi 0, %s72
      %s73 = sphi 0, %s70
      %s74 = sphi 0, %s73
      %s90 = sphi 0, %s74
      %s98 = sphi 0, %s100
      %s101 = sphi 0, %s98
      %s102 = sphi 0, %s101
      %s118 = sphi 0, %s102
      %s122 = sphi 0, %s122
      %s124 = sphi 0, %s122
      %s125 = sphi 0, %s124
      %s139 = sphi 0, %s125
      %s143 = sphi 0, %s143
      %s145 = sphi 0, %s143
      %s146 = sphi 0, %s145
      %s160 = sphi 0, %s146
      %s168 = sphi 0, %s170
      %s171 = sphi 0, %s168
      %s172 = sphi 0, %s171
      %s188 = sphi 0, %s172
    $region4: #{tpu_custom_call.1} parent=1 // loop_header_branch
      %23 = sbr.rel (%p21) target = $region8
    $region5: #{tpu_custom_call.1} parent=1 // loop_body
      %s25 = ssub.s32 %s20, 1
      %s26 = ssub.s32 %s20, 2
      %s33 = sadd.s32 1, %s28
      %p34 = scmp.ge.s32.totalorder %s33, 1
      %s35 = scalar_select %p34, 0, %s33
      %s36 = sadd.s32 1, %s27
      %s37 = scalar_select %p34, %s36, %s27
      %p38 = scmp.ge.s32.totalorder %s37, 2
      %s39 = scalar_select %p38, 0, %s37
      %s40 = ssub.s32 %s27, %s39
      %p41 = scmp.eq.s32.totalorder %s40, 0
      %s43 = sadd.s32 %s42, 1
      %s44 = scalar_select %p41, %s42, %s43
      %p47 = pneg %p41
      %p48 = scmp.eq.s32.totalorder %s20, 1
      %p49 = por %p47, %p48
      %p50 = scmp.ne.s32.totalorder %s42, %s45
      %p51 = scmp.eq.s32.totalorder %s20, 0
      %p52 = por %p50, %p51
      %p53 = scmp.ne.s32.totalorder %s42, %s45
      %p54 = scmp.eq.s32.totalorder %s25, 1
      %p55 = por %p53, %p54
      %p56 = scmp.ne.s32.totalorder %s45, %s46
      %p57 = scmp.eq.s32.totalorder %s25, 0
      %p58 = por %p56, %p57
      %p59 = scmp.ne.s32.totalorder %s45, %s46
      %p60 = scmp.eq.s32.totalorder %s26, 1
      %p61 = por %p59, %p60
      %p63 = scmp.ne.s32.totalorder %s46, %s62
      %p64 = scmp.eq.s32.totalorder %s26, 0
      %p65 = por %p63, %p64
      %s66 = ssub.s32 %s27, %s39
      %s67 = ssub.s32 %s28, %s35
      %s68 = sor.u32 %s66, %s67
      %p69 = scmp.eq.s32.totalorder %s68, 0
      %s71 = sadd.s32 %s70, 1
      %s72 = scalar_select %p69, %s70, %s71
      %p75 = pneg %p69
      %p76 = scmp.eq.s32.totalorder %s20, 1
      %p77 = por %p75, %p76
      %p78 = scmp.ne.s32.totalorder %s70, %s73
      %p79 = scmp.eq.s32.totalorder %s20, 0
      %p80 = por %p78, %p79
      %p81 = scmp.ne.s32.totalorder %s70, %s73
      %p82 = scmp.eq.s32.totalorder %s25, 1
      %p83 = por %p81, %p82
      %p84 = scmp.ne.s32.totalorder %s73, %s74
      %p85 = scmp.eq.s32.totalorder %s25, 0
      %p86 = por %p84, %p85
      %p87 = scmp.ne.s32.totalorder %s73, %s74
      %p88 = scmp.eq.s32.totalorder %s26, 1
      %p89 = por %p87, %p88
      %p91 = scmp.ne.s32.totalorder %s74, %s90
      %p92 = scmp.eq.s32.totalorder %s26, 0
      %p93 = por %p91, %p92
      %s94 = ssub.s32 %s27, %s39
      %s95 = ssub.s32 %s28, %s35
      %s96 = sor.u32 %s94, %s95
      %p97 = scmp.eq.s32.totalorder %s96, 0
      %s99 = sadd.s32 %s98, 1
      %s100 = scalar_select %p97, %s98, %s99
      %p103 = pneg %p97
      %p104 = scmp.eq.s32.totalorder %s20, 1
      %p105 = por %p103, %p104
      %p106 = scmp.ne.s32.totalorder %s98, %s101
      %p107 = scmp.eq.s32.totalorder %s20, 0
      %p108 = por %p106, %p107
      %p109 = scmp.ne.s32.totalorder %s98, %s101
      %p110 = scmp.eq.s32.totalorder %s25, 1
      %p111 = por %p109, %p110
      %p112 = scmp.ne.s32.totalorder %s101, %s102
      %p113 = scmp.eq.s32.totalorder %s25, 0
      %p114 = por %p112, %p113
      %p115 = scmp.ne.s32.totalorder %s101, %s102
      %p116 = scmp.eq.s32.totalorder %s26, 1
      %p117 = por %p115, %p116
      %p119 = scmp.ne.s32.totalorder %s102, %s118
      %p120 = scmp.eq.s32.totalorder %s26, 0
      %p121 = por %p119, %p120
      %s123 = sadd.s32 %s122, 1
      %p126 = scmp.eq.s32.totalorder %s20, 1
      %p127 = scmp.ne.s32.totalorder %s122, %s124
      %p128 = scmp.eq.s32.totalorder %s20, 0
      %p129 = por %p127, %p128
      %p130 = scmp.ne.s32.totalorder %s122, %s124
      %p131 = scmp.eq.s32.totalorder %s25, 1
      %p132 = por %p130, %p131
      %p133 = scmp.ne.s32.totalorder %s124, %s125
      %p134 = scmp.eq.s32.totalorder %s25, 0
      %p135 = por %p133, %p134
      %p136 = scmp.ne.s32.totalorder %s124, %s125
      %p137 = scmp.eq.s32.totalorder %s26, 1
      %p138 = por %p136, %p137
      %p140 = scmp.ne.s32.totalorder %s125, %s139
      %p141 = scmp.eq.s32.totalorder %s26, 0
      %p142 = por %p140, %p141
      %s144 = sadd.s32 %s143, 1
      %p147 = scmp.eq.s32.totalorder %s20, 1
      %p148 = scmp.ne.s32.totalorder %s143, %s145
      %p149 = scmp.eq.s32.totalorder %s20, 0
      %p150 = por %p148, %p149
      %p151 = scmp.ne.s32.totalorder %s143, %s145
      %p152 = scmp.eq.s32.totalorder %s25, 1
      %p153 = por %p151, %p152
      %p154 = scmp.ne.s32.totalorder %s145, %s146
      %p155 = scmp.eq.s32.totalorder %s25, 0
      %p156 = por %p154, %p155
      %p157 = scmp.ne.s32.totalorder %s145, %s146
      %p158 = scmp.eq.s32.totalorder %s26, 1
      %p159 = por %p157, %p158
      %p161 = scmp.ne.s32.totalorder %s146, %s160
      %p162 = scmp.eq.s32.totalorder %s26, 0
      %p163 = por %p161, %p162
      %s164 = ssub.s32 %s27, %s39
      %s165 = ssub.s32 %s28, %s35
      %s166 = sor.u32 %s164, %s165
      %p167 = scmp.eq.s32.totalorder %s166, 0
      %s169 = sadd.s32 %s168, 1
      %s170 = scalar_select %p167, %s168, %s169
      %p173 = pneg %p167
      %p174 = scmp.eq.s32.totalorder %s20, 1
      %p175 = por %p173, %p174
      %p176 = scmp.ne.s32.totalorder %s168, %s171
      %p177 = scmp.eq.s32.totalorder %s20, 0
      %p178 = por %p176, %p177
      %p179 = scmp.ne.s32.totalorder %s168, %s171
      %p180 = scmp.eq.s32.totalorder %s25, 1
      %p181 = por %p179, %p180
      %p182 = scmp.ne.s32.totalorder %s171, %s172
      %p183 = scmp.eq.s32.totalorder %s25, 0
      %p184 = por %p182, %p183
      %p185 = scmp.ne.s32.totalorder %s171, %s172
      %p186 = scmp.eq.s32.totalorder %s26, 1
      %p187 = por %p185, %p186
      %p189 = scmp.ne.s32.totalorder %s172, %s188
      %p190 = scmp.eq.s32.totalorder %s26, 0
      %p191 = por %p189, %p190
      %p192 = scmp.le.s32.totalorder 1, %s20
      %p193 = scmp.lt.s32.totalorder %s20, 3
      %p194 = pnand %p192, %p193
      %p195 = pneg %p194
      // Predicated region
      $region9: #{tpu_custom_call.1} parent=5 // pred_check
        _
      $region10: #{tpu_custom_call.1} parent=5 // pred_check_branch
        %197 = sbr.rel (%p194) target = $region12
      $region11: #{tpu_custom_call.1} parent=5 // pred_region
        %s198 = ssub.s32 %s20, 1
        // Predicated region
        $region13: #{tpu_custom_call.1} parent=11 // pred_check
          %p199 = pneg %p135
        $region14: #{tpu_custom_call.1} parent=11 // pred_check_branch
          %201 = sbr.rel (%p199) target = $region16
        $region15: #{tpu_custom_call.1} parent=11 // pred_region
          _
        $region16: #{tpu_custom_call.1} parent=11 // pred_fallthru
          _
        // Predicated region
        $region17: #{tpu_custom_call.1} parent=11 // pred_check
          %p202 = pneg %p156
        $region18: #{tpu_custom_call.1} parent=11 // pred_check_branch
          %204 = sbr.rel (%p202) target = $region20
        $region19: #{tpu_custom_call.1} parent=11 // pred_region
          _
        $region20: #{tpu_custom_call.1} parent=11 // pred_fallthru
          _
      $region12: #{tpu_custom_call.1} parent=5 // pred_fallthru
        _
      %p205 = scmp.lt.s32.totalorder %s20, 2
      // Predicated region
      $region21: #{tpu_custom_call.1} parent=5 // pred_check
        %p206 = pneg %p205
      $region22: #{tpu_custom_call.1} parent=5 // pred_check_branch
        %208 = sbr.rel (%p206) target = $region24
      $region23: #{tpu_custom_call.1} parent=5 // pred_region
        // Predicated region
        $region25: #{tpu_custom_call.1} parent=23 // pred_check
          %p209 = pneg %p52
        $region26: #{tpu_custom_call.1} parent=23 // pred_check_branch
          %211 = sbr.rel (%p209) target = $region28
        $region27: #{tpu_custom_call.1} parent=23 // pred_region
          %s212 = sand.u32 %s42, 1
          %s213 = scalar_lea.sflag [#allocation3], %s212
          %s214 = sand.u32 %s42, 1
          %s215 = smul.addr %s214, 4
          %s216 = scalar_lea.vmem [#allocation2], %s215
          %s218 = ssub.s32 64, 64
          %219 = vsyncadd %s213, %s218
          %s220 = smul.addr %s27, 64
          %s221 = scalar_lea.hbm %s0, %s220
          %s223 = sshll.u32 %s216, 4
          %s224 = int_to_ptr.vmem [resolvable:$true] %s223
          %226 = dma.hbm_to_vmem [thread:$0]  %s221, 64, %s224, %s213
        $region28: #{tpu_custom_call.1} parent=23 // pred_fallthru
          _
        // Predicated region
        $region29: #{tpu_custom_call.1} parent=23 // pred_check
          %p227 = pneg %p80
        $region30: #{tpu_custom_call.1} parent=23 // pred_check_branch
          %229 = sbr.rel (%p227) target = $region32
        $region31: #{tpu_custom_call.1} parent=23 // pred_region
          %s230 = sand.u32 %s20, 1
          %s231 = scalar_lea.sflag [#allocation6], %s230
          %s232 = sand.u32 %s70, 1
          %s233 = smul.addr %s232, 8
          %s234 = scalar_lea.vmem [#allocation5], %s233
          %s236 = ssub.s32 128, 128
          %237 = vsyncadd %s231, %s236
          %s238 = sadd.s32 %s28, %s27
          %s239 = smul.addr %s238, 128
          %s240 = scalar_lea.hbm %s1, %s239
          %s242 = sshll.u32 %s234, 4
          %s243 = int_to_ptr.vmem [resolvable:$true] %s242
          %245 = dma.hbm_to_vmem [thread:$0]  %s240, 128, %s243, %s231
        $region32: #{tpu_custom_call.1} parent=23 // pred_fallthru
          _
        // Predicated region
        $region33: #{tpu_custom_call.1} parent=23 // pred_check
          %p246 = pneg %p108
        $region34: #{tpu_custom_call.1} parent=23 // pred_check_branch
          %248 = sbr.rel (%p246) target = $region36
        $region35: #{tpu_custom_call.1} parent=23 // pred_region
          %s249 = sand.u32 %s20, 1
          %s250 = scalar_lea.sflag [#allocation6], %s249
          %s251 = sand.u32 %s98, 1
          %s252 = smul.addr %s251, 8
          %s253 = scalar_lea.vmem [#allocation7], %s252
          %s255 = ssub.s32 128, 128
          %256 = vsyncadd %s250, %s255
          %s257 = sadd.s32 %s28, %s27
          %s258 = smul.addr %s257, 128
          %s259 = scalar_lea.hbm %s2, %s258
          %s261 = sshll.u32 %s253, 4
          %s262 = int_to_ptr.vmem [resolvable:$true] %s261
          %264 = dma.hbm_to_vmem [thread:$0]  %s259, 128, %s262, %s250
        $region36: #{tpu_custom_call.1} parent=23 // pred_fallthru
          _
      $region24: #{tpu_custom_call.1} parent=5 // pred_fallthru
        _
      %p265 = scmp.le.s32.totalorder 1, %s20
      %p266 = scmp.lt.s32.totalorder %s20, 3
      %p267 = pnand %p265, %p266
      %p268 = pneg %p267
      // Predicated region
      $region37: #{tpu_custom_call.1} parent=5 // pred_check
        _
      $region38: #{tpu_custom_call.1} parent=5 // pred_check_branch
        %270 = sbr.rel (%p267) target = $region40
      $region39: #{tpu_custom_call.1} parent=5 // pred_region
        %s271 = ssub.s32 %s20, 1
        %s272 = sand.u32 %s45, 1
        %s273 = scalar_lea.sflag [#allocation3], %s272
        %s274 = sand.u32 %s45, 1
        %s275 = smul.addr %s274, 4
        %s276 = scalar_lea.vmem [#allocation2], %s275
        // Predicated region
        $region41: #{tpu_custom_call.1} parent=39 // pred_check
          %p277 = pneg %p58
        $region42: #{tpu_custom_call.1} parent=39 // pred_check_branch
          %279 = sbr.rel (%p277) target = $region44
        $region43: #{tpu_custom_call.1} parent=39 // pred_region
          %280 = dma.done %s273, 64
        $region44: #{tpu_custom_call.1} parent=39 // pred_fallthru
          _
        %s281 = sand.u32 %s25, 1
        %s282 = scalar_lea.sflag [#allocation6], %s281
        %s283 = sand.u32 %s73, 1
        %s284 = smul.addr %s283, 8
        %s285 = scalar_lea.vmem [#allocation5], %s284
        // Predicated region
        $region45: #{tpu_custom_call.1} parent=39 // pred_check
          %p286 = pneg %p86
        $region46: #{tpu_custom_call.1} parent=39 // pred_check_branch
          %288 = sbr.rel (%p286) target = $region48
        $region47: #{tpu_custom_call.1} parent=39 // pred_region
          %289 = dma.done %s282, 128
        $region48: #{tpu_custom_call.1} parent=39 // pred_fallthru
          _
        %s290 = sand.u32 %s25, 1
        %s291 = scalar_lea.sflag [#allocation6], %s290
        %s292 = sand.u32 %s101, 1
        %s293 = smul.addr %s292, 8
        %s294 = scalar_lea.vmem [#allocation7], %s293
        // Predicated region
        $region49: #{tpu_custom_call.1} parent=39 // pred_check
          %p295 = pneg %p114
        $region50: #{tpu_custom_call.1} parent=39 // pred_check_branch
          %297 = sbr.rel (%p295) target = $region52
        $region51: #{tpu_custom_call.1} parent=39 // pred_region
          %298 = dma.done %s291, 128
        $region52: #{tpu_custom_call.1} parent=39 // pred_fallthru
          _
        %s299 = sand.u32 %s45, 1
        %s300 = scalar_lea.sflag [#allocation3], %s299
        %s301 = sand.u32 %s45, 1
        %s302 = smul.addr %s301, 4
        %s303 = scalar_lea.vmem [#allocation2], %s302
        %p304 = pneg %p58
        %p305 = pneg %p55
        %s306 = sand.u32 %s25, 1
        %s307 = scalar_lea.sflag [#allocation6], %s306
        %s308 = sand.u32 %s73, 1
        %s309 = smul.addr %s308, 8
        %s310 = scalar_lea.vmem [#allocation5], %s309
        %p311 = pneg %p86
        %p312 = pneg %p83
        %s313 = sand.u32 %s25, 1
        %s314 = scalar_lea.sflag [#allocation6], %s313
        %s315 = sand.u32 %s101, 1
        %s316 = smul.addr %s315, 8
        %s317 = scalar_lea.vmem [#allocation7], %s316
        %p318 = pneg %p114
        %p319 = pneg %p111
        %p320 = pneg %p135
        %p321 = pneg %p132
        %p322 = pneg %p156
        %p323 = pneg %p153
        %p324 = pneg %p184
        %p325 = pneg %p181
        %s326 = sand.u32 %s171, 1
        %s327 = scalar_lea.sflag [#allocation4], %s326
        %s328 = sand.u32 %s171, 1
        %s329 = smul.addr %s328, 8
        %s330 = scalar_lea.vmem [#allocation8], %s329
        %v332 = vld [vmem:[%s276] sm:$0xf]
        %v333 = vunpack.c.l.bf16 %v332
        %v334 = vld [vmem:[%s294] sm:$0xff]
        %v335 = vld [vmem:[%s285] sm:$0xff]
        %v336 = vlaneseq
        %v337 = vshrl.u32 %v336, 7
        %v338 = vadd.s32 %v337, 8
        %v339 = vadd.s32 %v337, 16
        %v340 = vadd.s32 %v337, 24
        %v341 = vadd.s32 %v337, 32
        %v342 = vadd.s32 %v337, 40
        %v343 = vadd.s32 %v337, 48
        %v344 = vadd.s32 %v337, 56
        %v345 = vadd.s32 %v337, 64
        %v346 = vadd.s32 %v337, 72
        %v347 = vadd.s32 %v337, 80
        %v348 = vadd.s32 %v337, 88
        %v349 = vadd.s32 %v337, 96
        %v350 = vadd.s32 %v337, 104
        %v351 = vadd.s32 %v337, 112
        %v352 = vadd.s32 %v337, 120
        %v353 = vlaneseq
        %v354 = vshrl.u32 %v353, 7
        %v355 = vsub.s32 0, %v354
        %v356 = vrot.slane %v334, %v355
        %vm357 = vcmp.eq.s32.totalorder %v337, %v356
        %vm358 = vcmp.eq.s32.totalorder %v338, %v356
        %vm359 = vcmp.eq.s32.totalorder %v339, %v356
        %vm360 = vcmp.eq.s32.totalorder %v340, %v356
        %vm361 = vcmp.eq.s32.totalorder %v341, %v356
        %vm362 = vcmp.eq.s32.totalorder %v342, %v356
        %vm363 = vcmp.eq.s32.totalorder %v343, %v356
        %vm364 = vcmp.eq.s32.totalorder %v344, %v356
        %vm365 = vcmp.eq.s32.totalorder %v345, %v356
        %vm366 = vcmp.eq.s32.totalorder %v346, %v356
        %vm367 = vcmp.eq.s32.totalorder %v347, %v356
        %vm368 = vcmp.eq.s32.totalorder %v348, %v356
        %vm369 = vcmp.eq.s32.totalorder %v349, %v356
        %vm370 = vcmp.eq.s32.totalorder %v350, %v356
        %vm371 = vcmp.eq.s32.totalorder %v351, %v356
        %vm372 = vcmp.eq.s32.totalorder %v352, %v356
        %v373 = vsel %vm357, 1, 0
        %v374 = vsel %vm358, 1, 0
        %v375 = vsel %vm359, 1, 0
        %v376 = vsel %vm360, 1, 0
        %v377 = vsel %vm361, 1, 0
        %v378 = vsel %vm362, 1, 0
        %v379 = vsel %vm363, 1, 0
        %v380 = vsel %vm364, 1, 0
        %v381 = vsel %vm365, 1, 0
        %v382 = vsel %vm366, 1, 0
        %v383 = vsel %vm367, 1, 0
        %v384 = vsel %vm368, 1, 0
        %v385 = vsel %vm369, 1, 0
        %v386 = vsel %vm370, 1, 0
        %v387 = vsel %vm371, 1, 0
        %v388 = vsel %vm372, 1, 0
        %v389 = vcvt.s32.f32 %v373
        %v390 = vcvt.s32.f32 %v374
        %v391 = vcvt.s32.f32 %v375
        %v392 = vcvt.s32.f32 %v376
        %v393 = vcvt.s32.f32 %v377
        %v394 = vcvt.s32.f32 %v378
        %v395 = vcvt.s32.f32 %v379
        %v396 = vcvt.s32.f32 %v380
        %v397 = vcvt.s32.f32 %v381
        %v398 = vcvt.s32.f32 %v382
        %v399 = vcvt.s32.f32 %v383
        %v400 = vcvt.s32.f32 %v384
        %v401 = vcvt.s32.f32 %v385
        %v402 = vcvt.s32.f32 %v386
        %v403 = vcvt.s32.f32 %v387
        %v404 = vcvt.s32.f32 %v388
        %v405 = vlaneseq
        %v406 = vshrl.u32 %v405, 7
        %v407 = vsub.s32 0, %v406
        %v408 = vrot.slane %v335, %v407
        %vm409 = vcmp.eq.s32.totalorder %v337, %v408
        %vm410 = vcmp.eq.s32.totalorder %v338, %v408
        %vm411 = vcmp.eq.s32.totalorder %v339, %v408
        %vm412 = vcmp.eq.s32.totalorder %v340, %v408
        %vm413 = vcmp.eq.s32.totalorder %v341, %v408
        %vm414 = vcmp.eq.s32.totalorder %v342, %v408
        %vm415 = vcmp.eq.s32.totalorder %v343, %v408
        %vm416 = vcmp.eq.s32.totalorder %v344, %v408
        %vm417 = vcmp.eq.s32.totalorder %v345, %v408
        %vm418 = vcmp.eq.s32.totalorder %v346, %v408
        %vm419 = vcmp.eq.s32.totalorder %v347, %v408
        %vm420 = vcmp.eq.s32.totalorder %v348, %v408
        %vm421 = vcmp.eq.s32.totalorder %v349, %v408
        %vm422 = vcmp.eq.s32.totalorder %v350, %v408
        %vm423 = vcmp.eq.s32.totalorder %v351, %v408
        %vm424 = vcmp.eq.s32.totalorder %v352, %v408
        %v425 = vsel %vm409, 1, 0
        %v426 = vsel %vm410, 1, 0
        %v427 = vsel %vm411, 1, 0
        %v428 = vsel %vm412, 1, 0
        %v429 = vsel %vm413, 1, 0
        %v430 = vsel %vm414, 1, 0
        %v431 = vsel %vm415, 1, 0
        %v432 = vsel %vm416, 1, 0
        %v433 = vsel %vm417, 1, 0
        %v434 = vsel %vm418, 1, 0
        %v435 = vsel %vm419, 1, 0
        %v436 = vsel %vm420, 1, 0
        %v437 = vsel %vm421, 1, 0
        %v438 = vsel %vm422, 1, 0
        %v439 = vsel %vm423, 1, 0
        %v440 = vsel %vm424, 1, 0
        %v441 = vcvt.s32.f32 %v425
        %v442 = vcvt.s32.f32 %v426
        %v443 = vcvt.s32.f32 %v427
        %v444 = vcvt.s32.f32 %v428
        %v445 = vcvt.s32.f32 %v429
        %v446 = vcvt.s32.f32 %v430
        %v447 = vcvt.s32.f32 %v431
        %v448 = vcvt.s32.f32 %v432
        %v449 = vcvt.s32.f32 %v433
        %v450 = vcvt.s32.f32 %v434
        %v451 = vcvt.s32.f32 %v435
        %v452 = vcvt.s32.f32 %v436
        %v453 = vcvt.s32.f32 %v437
        %v454 = vcvt.s32.f32 %v438
        %v455 = vcvt.s32.f32 %v439
        %v456 = vcvt.s32.f32 %v440
        %v457 = vsub.f32 %v389, %v441
        %v458 = vsub.f32 %v390, %v442
        %v459 = vsub.f32 %v391, %v443
        %v460 = vsub.f32 %v392, %v444
        %v461 = vsub.f32 %v393, %v445
        %v462 = vsub.f32 %v394, %v446
        %v463 = vsub.f32 %v395, %v447
        %v464 = vsub.f32 %v396, %v448
        %v465 = vsub.f32 %v397, %v449
        %v466 = vsub.f32 %v398, %v450
        %v467 = vsub.f32 %v399, %v451
        %v468 = vsub.f32 %v400, %v452
        %v469 = vsub.f32 %v401, %v453
        %v470 = vsub.f32 %v402, %v454
        %v471 = vsub.f32 %v403, %v455
        %v472 = vsub.f32 %v404, %v456
        %473 = vmatprep.subr.mxu0 0.0
        %474 = vmatpush1.msra.mxu0 %v457
        %475 = vmatprep.subr.mxu0 0.0
        %476 = vmatpush1.msra.mxu0 %v458
        %477 = vmatprep.subr.mxu0 0.0
        %478 = vmatpush1.msra.mxu0 %v459
        %479 = vmatprep.subr.mxu0 0.0
        %480 = vmatpush1.msra.mxu0 %v460
        %481 = vmatprep.subr.mxu0 0.0
        %482 = vmatpush1.msra.mxu0 %v461
        %483 = vmatprep.subr.mxu0 0.0
        %484 = vmatpush1.msra.mxu0 %v462
        %485 = vmatprep.subr.mxu0 0.0
        %486 = vmatpush1.msra.mxu0 %v463
        %487 = vmatprep.subr.mxu0 0.0
        %488 = vmatpush1.msra.mxu0 %v464
        %489 = vmatprep.subr.mxu0 0.0
        %490 = vmatpush1.msra.mxu0 %v465
        %491 = vmatprep.subr.mxu0 0.0
        %492 = vmatpush1.msra.mxu0 %v466
        %493 = vmatprep.subr.mxu0 0.0
        %494 = vmatpush1.msra.mxu0 %v467
        %495 = vmatprep.subr.mxu0 0.0
        %496 = vmatpush1.msra.mxu0 %v468
        %497 = vmatprep.subr.mxu0 0.0
        %498 = vmatpush1.msra.mxu0 %v469
        %499 = vmatprep.subr.mxu0 0.0
        %500 = vmatpush1.msra.mxu0 %v470
        %501 = vmatprep.subr.mxu0 0.0
        %502 = vmatpush1.msra.mxu0 %v471
        %503 = vmatprep.subr.mxu0 0.0
        %504 = vmatpush1.msra.mxu0 %v472
        %505 = vmatprep.subr.mxu0 0.0
        %506 = vmatpush1.msra.mxu0 0.0
        %507 = vmatprep.subr.mxu0 0.0
        %508 = vmatpush1.msra.mxu0 0.0
        %509 = vmatprep.subr.mxu0 0.0
        %510 = vmatpush1.msra.mxu0 0.0
        %511 = vmatprep.subr.mxu0 0.0
        %512 = vmatpush1.msra.mxu0 0.0
        %513 = vmatprep.subr.mxu0 0.0
        %514 = vmatpush1.msra.mxu0 0.0
        %515 = vmatprep.subr.mxu0 0.0
        %516 = vmatpush1.msra.mxu0 0.0
        %517 = vmatprep.subr.mxu0 0.0
        %518 = vmatpush1.msra.mxu0 0.0
        %519 = vmatprep.subr.mxu0 0.0
        %520 = vmatpush1.msra.mxu0 0.0
        %521 = vmatprep.subr.mxu0 0.0
        %522 = vmatpush1.msra.mxu0 0.0
        %523 = vmatprep.subr.mxu0 0.0
        %524 = vmatpush1.msra.mxu0 0.0
        %525 = vmatprep.subr.mxu0 0.0
        %526 = vmatpush1.msra.mxu0 0.0
        %527 = vmatprep.subr.mxu0 0.0
        %528 = vmatpush1.msra.mxu0 0.0
        %529 = vmatprep.subr.mxu0 0.0
        %530 = vmatpush1.msra.mxu0 0.0
        %531 = vmatprep.subr.mxu0 0.0
        %532 = vmatpush1.msra.mxu0 0.0
        %533 = vmatprep.subr.mxu0 0.0
        %534 = vmatpush1.msra.mxu0 0.0
        %535 = vmatprep.subr.mxu0 0.0
        %536 = vmatpush1.msra.mxu0 0.0
        %537 = vmatprep.mubr.f32.mxu0 0.0
        %538 = vmatmul.mubr.f32.gmra.mrb[0].mxu0 %v333
        %v539 = vpop.f32.mrb[0].mxu0
        %v540 = vadd.f32 0.0, %v539
        %v541 = vpop.f32.mrb[0].mxu0
        %542 = vdwg.mxu0
        %v543 = vlaneseq
        %v544 = vshrl.u32 %v543, 7
        %v545 = vsub.s32 1, %v544
        %v546 = vrot.slane %v334, %v545
        %vm547 = vcmp.eq.s32.totalorder %v337, %v546
        %vm548 = vcmp.eq.s32.totalorder %v338, %v546
        %vm549 = vcmp.eq.s32.totalorder %v339, %v546
        %vm550 = vcmp.eq.s32.totalorder %v340, %v546
        %vm551 = vcmp.eq.s32.totalorder %v341, %v546
        %vm552 = vcmp.eq.s32.totalorder %v342, %v546
        %vm553 = vcmp.eq.s32.totalorder %v343, %v546
        %vm554 = vcmp.eq.s32.totalorder %v344, %v546
        %vm555 = vcmp.eq.s32.totalorder %v345, %v546
        %vm556 = vcmp.eq.s32.totalorder %v346, %v546
        %vm557 = vcmp.eq.s32.totalorder %v347, %v546
        %vm558 = vcmp.eq.s32.totalorder %v348, %v546
        %vm559 = vcmp.eq.s32.totalorder %v349, %v546
        %vm560 = vcmp.eq.s32.totalorder %v350, %v546
        %vm561 = vcmp.eq.s32.totalorder %v351, %v546
        %vm562 = vcmp.eq.s32.totalorder %v352, %v546
        %v563 = vsel %vm547, 1, 0
        %v564 = vsel %vm548, 1, 0
        %v565 = vsel %vm549, 1, 0
        %v566 = vsel %vm550, 1, 0
        %v567 = vsel %vm551, 1, 0
        %v568 = vsel %vm552, 1, 0
        %v569 = vsel %vm553, 1, 0
        %v570 = vsel %vm554, 1, 0
        %v571 = vsel %vm555, 1, 0
        %v572 = vsel %vm556, 1, 0
        %v573 = vsel %vm557, 1, 0
        %v574 = vsel %vm558, 1, 0
        %v575 = vsel %vm559, 1, 0
        %v576 = vsel %vm560, 1, 0
        %v577 = vsel %vm561, 1, 0
        %v578 = vsel %vm562, 1, 0
        %v579 = vcvt.s32.f32 %v563
        %v580 = vcvt.s32.f32 %v564
        %v581 = vcvt.s32.f32 %v565
        %v582 = vcvt.s32.f32 %v566
        %v583 = vcvt.s32.f32 %v567
        %v584 = vcvt.s32.f32 %v568
        %v585 = vcvt.s32.f32 %v569
        %v586 = vcvt.s32.f32 %v570
        %v587 = vcvt.s32.f32 %v571
        %v588 = vcvt.s32.f32 %v572
        %v589 = vcvt.s32.f32 %v573
        %v590 = vcvt.s32.f32 %v574
        %v591 = vcvt.s32.f32 %v575
        %v592 = vcvt.s32.f32 %v576
        %v593 = vcvt.s32.f32 %v577
        %v594 = vcvt.s32.f32 %v578
        %v595 = vlaneseq
        %v596 = vshrl.u32 %v595, 7
        %v597 = vsub.s32 1, %v596
        %v598 = vrot.slane %v335, %v597
        %vm599 = vcmp.eq.s32.totalorder %v337, %v598
        %vm600 = vcmp.eq.s32.totalorder %v338, %v598
        %vm601 = vcmp.eq.s32.totalorder %v339, %v598
        %vm602 = vcmp.eq.s32.totalorder %v340, %v598
        %vm603 = vcmp.eq.s32.totalorder %v341, %v598
        %vm604 = vcmp.eq.s32.totalorder %v342, %v598
        %vm605 = vcmp.eq.s32.totalorder %v343, %v598
        %vm606 = vcmp.eq.s32.totalorder %v344, %v598
        %vm607 = vcmp.eq.s32.totalorder %v345, %v598
        %vm608 = vcmp.eq.s32.totalorder %v346, %v598
        %vm609 = vcmp.eq.s32.totalorder %v347, %v598
        %vm610 = vcmp.eq.s32.totalorder %v348, %v598
        %vm611 = vcmp.eq.s32.totalorder %v349, %v598
        %vm612 = vcmp.eq.s32.totalorder %v350, %v598
        %vm613 = vcmp.eq.s32.totalorder %v351, %v598
        %vm614 = vcmp.eq.s32.totalorder %v352, %v598
        %v615 = vsel %vm599, 1, 0
        %v616 = vsel %vm600, 1, 0
        %v617 = vsel %vm601, 1, 0
        %v618 = vsel %vm602, 1, 0
        %v619 = vsel %vm603, 1, 0
        %v620 = vsel %vm604, 1, 0
        %v621 = vsel %vm605, 1, 0
        %v622 = vsel %vm606, 1, 0
        %v623 = vsel %vm607, 1, 0
        %v624 = vsel %vm608, 1, 0
        %v625 = vsel %vm609, 1, 0
        %v626 = vsel %vm610, 1, 0
        %v627 = vsel %vm611, 1, 0
        %v628 = vsel %vm612, 1, 0
        %v629 = vsel %vm613, 1, 0
        %v630 = vsel %vm614, 1, 0
        %v631 = vcvt.s32.f32 %v615
        %v632 = vcvt.s32.f32 %v616
        %v633 = vcvt.s32.f32 %v617
        %v634 = vcvt.s32.f32 %v618
        %v635 = vcvt.s32.f32 %v619
        %v636 = vcvt.s32.f32 %v620
        %v637 = vcvt.s32.f32 %v621
        %v638 = vcvt.s32.f32 %v622
        %v639 = vcvt.s32.f32 %v623
        %v640 = vcvt.s32.f32 %v624
        %v641 = vcvt.s32.f32 %v625
        %v642 = vcvt.s32.f32 %v626
        %v643 = vcvt.s32.f32 %v627
        %v644 = vcvt.s32.f32 %v628
        %v645 = vcvt.s32.f32 %v629
        %v646 = vcvt.s32.f32 %v630
        %v647 = vsub.f32 %v579, %v631
        %v648 = vsub.f32 %v580, %v632
        %v649 = vsub.f32 %v581, %v633
        %v650 = vsub.f32 %v582, %v634
        %v651 = vsub.f32 %v583, %v635
        %v652 = vsub.f32 %v584, %v636
        %v653 = vsub.f32 %v585, %v637
        %v654 = vsub.f32 %v586, %v638
        %v655 = vsub.f32 %v587, %v639
        %v656 = vsub.f32 %v588, %v640
        %v657 = vsub.f32 %v589, %v641
        %v658 = vsub.f32 %v590, %v642
        %v659 = vsub.f32 %v591, %v643
        %v660 = vsub.f32 %v592, %v644
        %v661 = vsub.f32 %v593, %v645
        %v662 = vsub.f32 %v594, %v646
        %663 = vmatprep.subr.mxu0 0.0
        %664 = vmatpush1.msra.mxu0 %v647
        %665 = vmatprep.subr.mxu0 0.0
        %666 = vmatpush1.msra.mxu0 %v648
        %667 = vmatprep.subr.mxu0 0.0
        %668 = vmatpush1.msra.mxu0 %v649
        %669 = vmatprep.subr.mxu0 0.0
        %670 = vmatpush1.msra.mxu0 %v650
        %671 = vmatprep.subr.mxu0 0.0
        %672 = vmatpush1.msra.mxu0 %v651
        %673 = vmatprep.subr.mxu0 0.0
        %674 = vmatpush1.msra.mxu0 %v652
        %675 = vmatprep.subr.mxu0 0.0
        %676 = vmatpush1.msra.mxu0 %v653
        %677 = vmatprep.subr.mxu0 0.0
        %678 = vmatpush1.msra.mxu0 %v654
        %679 = vmatprep.subr.mxu0 0.0
        %680 = vmatpush1.msra.mxu0 %v655
        %681 = vmatprep.subr.mxu0 0.0
        %682 = vmatpush1.msra.mxu0 %v656
        %683 = vmatprep.subr.mxu0 0.0
        %684 = vmatpush1.msra.mxu0 %v657
        %685 = vmatprep.subr.mxu0 0.0
        %686 = vmatpush1.msra.mxu0 %v658
        %687 = vmatprep.subr.mxu0 0.0
        %688 = vmatpush1.msra.mxu0 %v659
        %689 = vmatprep.subr.mxu0 0.0
        %690 = vmatpush1.msra.mxu0 %v660
        %691 = vmatprep.subr.mxu0 0.0
        %692 = vmatpush1.msra.mxu0 %v661
        %693 = vmatprep.subr.mxu0 0.0
        %694 = vmatpush1.msra.mxu0 %v662
        %695 = vmatprep.subr.mxu0 0.0
        %696 = vmatpush1.msra.mxu0 0.0
        %697 = vmatprep.subr.mxu0 0.0
        %698 = vmatpush1.msra.mxu0 0.0
        %699 = vmatprep.subr.mxu0 0.0
        %700 = vmatpush1.msra.mxu0 0.0
        %701 = vmatprep.subr.mxu0 0.0
        %702 = vmatpush1.msra.mxu0 0.0
        %703 = vmatprep.subr.mxu0 0.0
        %704 = vmatpush1.msra.mxu0 0.0
        %705 = vmatprep.subr.mxu0 0.0
        %706 = vmatpush1.msra.mxu0 0.0
        %707 = vmatprep.subr.mxu0 0.0
        %708 = vmatpush1.msra.mxu0 0.0
        %709 = vmatprep.subr.mxu0 0.0
        %710 = vmatpush1.msra.mxu0 0.0
        %711 = vmatprep.subr.mxu0 0.0
        %712 = vmatpush1.msra.mxu0 0.0
        %713 = vmatprep.subr.mxu0 0.0
        %714 = vmatpush1.msra.mxu0 0.0
        %715 = vmatprep.subr.mxu0 0.0
        %716 = vmatpush1.msra.mxu0 0.0
        %717 = vmatprep.subr.mxu0 0.0
        %718 = vmatpush1.msra.mxu0 0.0
        %719 = vmatprep.subr.mxu0 0.0
        %720 = vmatpush1.msra.mxu0 0.0
        %721 = vmatprep.subr.mxu0 0.0
        %722 = vmatpush1.msra.mxu0 0.0
        %723 = vmatprep.subr.mxu0 0.0
        %724 = vmatpush1.msra.mxu0 0.0
        %725 = vmatprep.subr.mxu0 0.0
        %726 = vmatpush1.msra.mxu0 0.0
        %727 = vmatprep.mubr.f32.mxu0 0.0
        %728 = vmatmul.mubr.f32.gmra.mrb[0].mxu0 %v333
        %v729 = vpop.f32.mrb[0].mxu0
        %v730 = vadd.f32 0.0, %v729
        %v731 = vpop.f32.mrb[0].mxu0
        %732 = vdwg.mxu0
        %v733 = vmax.f32 %v540, %v730
        %v734 = vlaneseq
        %v735 = vshrl.u32 %v734, 7
        %v736 = vsub.s32 2, %v735
        %v737 = vrot.slane %v334, %v736
        %vm738 = vcmp.eq.s32.totalorder %v337, %v737
        %vm739 = vcmp.eq.s32.totalorder %v338, %v737
        %vm740 = vcmp.eq.s32.totalorder %v339, %v737
        %vm741 = vcmp.eq.s32.totalorder %v340, %v737
        %vm742 = vcmp.eq.s32.totalorder %v341, %v737
        %vm743 = vcmp.eq.s32.totalorder %v342, %v737
        %vm744 = vcmp.eq.s32.totalorder %v343, %v737
        %vm745 = vcmp.eq.s32.totalorder %v344, %v737
        %vm746 = vcmp.eq.s32.totalorder %v345, %v737
        %vm747 = vcmp.eq.s32.totalorder %v346, %v737
        %vm748 = vcmp.eq.s32.totalorder %v347, %v737
        %vm749 = vcmp.eq.s32.totalorder %v348, %v737
        %vm750 = vcmp.eq.s32.totalorder %v349, %v737
        %vm751 = vcmp.eq.s32.totalorder %v350, %v737
        %vm752 = vcmp.eq.s32.totalorder %v351, %v737
        %vm753 = vcmp.eq.s32.totalorder %v352, %v737
        %v754 = vsel %vm738, 1, 0
        %v755 = vsel %vm739, 1, 0
        %v756 = vsel %vm740, 1, 0
        %v757 = vsel %vm741, 1, 0
        %v758 = vsel %vm742, 1, 0
        %v759 = vsel %vm743, 1, 0
        %v760 = vsel %vm744, 1, 0
        %v761 = vsel %vm745, 1, 0
        %v762 = vsel %vm746, 1, 0
        %v763 = vsel %vm747, 1, 0
        %v764 = vsel %vm748, 1, 0
        %v765 = vsel %vm749, 1, 0
        %v766 = vsel %vm750, 1, 0
        %v767 = vsel %vm751, 1, 0
        %v768 = vsel %vm752, 1, 0
        %v769 = vsel %vm753, 1, 0
        %v770 = vcvt.s32.f32 %v754
        %v771 = vcvt.s32.f32 %v755
        %v772 = vcvt.s32.f32 %v756
        %v773 = vcvt.s32.f32 %v757
        %v774 = vcvt.s32.f32 %v758
        %v775 = vcvt.s32.f32 %v759
        %v776 = vcvt.s32.f32 %v760
        %v777 = vcvt.s32.f32 %v761
        %v778 = vcvt.s32.f32 %v762
        %v779 = vcvt.s32.f32 %v763
        %v780 = vcvt.s32.f32 %v764
        %v781 = vcvt.s32.f32 %v765
        %v782 = vcvt.s32.f32 %v766
        %v783 = vcvt.s32.f32 %v767
        %v784 = vcvt.s32.f32 %v768
        %v785 = vcvt.s32.f32 %v769
        %v786 = vlaneseq
        %v787 = vshrl.u32 %v786, 7
        %v788 = vsub.s32 2, %v787
        %v789 = vrot.slane %v335, %v788
        %vm790 = vcmp.eq.s32.totalorder %v337, %v789
        %vm791 = vcmp.eq.s32.totalorder %v338, %v789
        %vm792 = vcmp.eq.s32.totalorder %v339, %v789
        %vm793 = vcmp.eq.s32.totalorder %v340, %v789
        %vm794 = vcmp.eq.s32.totalorder %v341, %v789
        %vm795 = vcmp.eq.s32.totalorder %v342, %v789
        %vm796 = vcmp.eq.s32.totalorder %v343, %v789
        %vm797 = vcmp.eq.s32.totalorder %v344, %v789
        %vm798 = vcmp.eq.s32.totalorder %v345, %v789
        %vm799 = vcmp.eq.s32.totalorder %v346, %v789
        %vm800 = vcmp.eq.s32.totalorder %v347, %v789
        %vm801 = vcmp.eq.s32.totalorder %v348, %v789
        %vm802 = vcmp.eq.s32.totalorder %v349, %v789
        %vm803 = vcmp.eq.s32.totalorder %v350, %v789
        %vm804 = vcmp.eq.s32.totalorder %v351, %v789
        %vm805 = vcmp.eq.s32.totalorder %v352, %v789
        %v806 = vsel %vm790, 1, 0
        %v807 = vsel %vm791, 1, 0
        %v808 = vsel %vm792, 1, 0
        %v809 = vsel %vm793, 1, 0
        %v810 = vsel %vm794, 1, 0
        %v811 = vsel %vm795, 1, 0
        %v812 = vsel %vm796, 1, 0
        %v813 = vsel %vm797, 1, 0
        %v814 = vsel %vm798, 1, 0
        %v815 = vsel %vm799, 1, 0
        %v816 = vsel %vm800, 1, 0
        %v817 = vsel %vm801, 1, 0
        %v818 = vsel %vm802, 1, 0
        %v819 = vsel %vm803, 1, 0
        %v820 = vsel %vm804, 1, 0
        %v821 = vsel %vm805, 1, 0
        %v822 = vcvt.s32.f32 %v806
        %v823 = vcvt.s32.f32 %v807
        %v824 = vcvt.s32.f32 %v808
        %v825 = vcvt.s32.f32 %v809
        %v826 = vcvt.s32.f32 %v810
        %v827 = vcvt.s32.f32 %v811
        %v828 = vcvt.s32.f32 %v812
        %v829 = vcvt.s32.f32 %v813
        %v830 = vcvt.s32.f32 %v814
        %v831 = vcvt.s32.f32 %v815
        %v832 = vcvt.s32.f32 %v816
        %v833 = vcvt.s32.f32 %v817
        %v834 = vcvt.s32.f32 %v818
        %v835 = vcvt.s32.f32 %v819
        %v836 = vcvt.s32.f32 %v820
        %v837 = vcvt.s32.f32 %v821
        %v838 = vsub.f32 %v770, %v822
        %v839 = vsub.f32 %v771, %v823
        %v840 = vsub.f32 %v772, %v824
        %v841 = vsub.f32 %v773, %v825
        %v842 = vsub.f32 %v774, %v826
        %v843 = vsub.f32 %v775, %v827
        %v844 = vsub.f32 %v776, %v828
        %v845 = vsub.f32 %v777, %v829
        %v846 = vsub.f32 %v778, %v830
        %v847 = vsub.f32 %v779, %v831
        %v848 = vsub.f32 %v780, %v832
        %v849 = vsub.f32 %v781, %v833
        %v850 = vsub.f32 %v782, %v834
        %v851 = vsub.f32 %v783, %v835
        %v852 = vsub.f32 %v784, %v836
        %v853 = vsub.f32 %v785, %v837
        %854 = vmatprep.subr.mxu0 0.0
        %855 = vmatpush1.msra.mxu0 %v838
        %856 = vmatprep.subr.mxu0 0.0
        %857 = vmatpush1.msra.mxu0 %v839
        %858 = vmatprep.subr.mxu0 0.0
        %859 = vmatpush1.msra.mxu0 %v840
        %860 = vmatprep.subr.mxu0 0.0
        %861 = vmatpush1.msra.mxu0 %v841
        %862 = vmatprep.subr.mxu0 0.0
        %863 = vmatpush1.msra.mxu0 %v842
        %864 = vmatprep.subr.mxu0 0.0
        %865 = vmatpush1.msra.mxu0 %v843
        %866 = vmatprep.subr.mxu0 0.0
        %867 = vmatpush1.msra.mxu0 %v844
        %868 = vmatprep.subr.mxu0 0.0
        %869 = vmatpush1.msra.mxu0 %v845
        %870 = vmatprep.subr.mxu0 0.0
        %871 = vmatpush1.msra.mxu0 %v846
        %872 = vmatprep.subr.mxu0 0.0
        %873 = vmatpush1.msra.mxu0 %v847
        %874 = vmatprep.subr.mxu0 0.0
        %875 = vmatpush1.msra.mxu0 %v848
        %876 = vmatprep.subr.mxu0 0.0
        %877 = vmatpush1.msra.mxu0 %v849
        %878 = vmatprep.subr.mxu0 0.0
        %879 = vmatpush1.msra.mxu0 %v850
        %880 = vmatprep.subr.mxu0 0.0
        %881 = vmatpush1.msra.mxu0 %v851
        %882 = vmatprep.subr.mxu0 0.0
        %883 = vmatpush1.msra.mxu0 %v852
        %884 = vmatprep.subr.mxu0 0.0
        %885 = vmatpush1.msra.mxu0 %v853
        %886 = vmatprep.subr.mxu0 0.0
        %887 = vmatpush1.msra.mxu0 0.0
        %888 = vmatprep.subr.mxu0 0.0
        %889 = vmatpush1.msra.mxu0 0.0
        %890 = vmatprep.subr.mxu0 0.0
        %891 = vmatpush1.msra.mxu0 0.0
        %892 = vmatprep.subr.mxu0 0.0
        %893 = vmatpush1.msra.mxu0 0.0
        %894 = vmatprep.subr.mxu0 0.0
        %895 = vmatpush1.msra.mxu0 0.0
        %896 = vmatprep.subr.mxu0 0.0
        %897 = vmatpush1.msra.mxu0 0.0
        %898 = vmatprep.subr.mxu0 0.0
        %899 = vmatpush1.msra.mxu0 0.0
        %900 = vmatprep.subr.mxu0 0.0
        %901 = vmatpush1.msra.mxu0 0.0
        %902 = vmatprep.subr.mxu0 0.0
        %903 = vmatpush1.msra.mxu0 0.0
        %904 = vmatprep.subr.mxu0 0.0
        %905 = vmatpush1.msra.mxu0 0.0
        %906 = vmatprep.subr.mxu0 0.0
        %907 = vmatpush1.msra.mxu0 0.0
        %908 = vmatprep.subr.mxu0 0.0
        %909 = vmatpush1.msra.mxu0 0.0
        %910 = vmatprep.subr.mxu0 0.0
        %911 = vmatpush1.msra.mxu0 0.0
        %912 = vmatprep.subr.mxu0 0.0
        %913 = vmatpush1.msra.mxu0 0.0
        %914 = vmatprep.subr.mxu0 0.0
        %915 = vmatpush1.msra.mxu0 0.0
        %916 = vmatprep.subr.mxu0 0.0
        %917 = vmatpush1.msra.mxu0 0.0
        %918 = vmatprep.mubr.f32.mxu0 0.0
        %919 = vmatmul.mubr.f32.gmra.mrb[0].mxu0 %v333
        %v920 = vpop.f32.mrb[0].mxu0
        %v921 = vadd.f32 0.0, %v920
        %v922 = vpop.f32.mrb[0].mxu0
        %923 = vdwg.mxu0
        %v924 = vmax.f32 %v733, %v921
        %v925 = vlaneseq
        %v926 = vshrl.u32 %v925, 7
        %v927 = vsub.s32 3, %v926
        %v928 = vrot.slane %v334, %v927
        %vm929 = vcmp.eq.s32.totalorder %v337, %v928
        %vm930 = vcmp.eq.s32.totalorder %v338, %v928
        %vm931 = vcmp.eq.s32.totalorder %v339, %v928
        %vm932 = vcmp.eq.s32.totalorder %v340, %v928
        %vm933 = vcmp.eq.s32.totalorder %v341, %v928
        %vm934 = vcmp.eq.s32.totalorder %v342, %v928
        %vm935 = vcmp.eq.s32.totalorder %v343, %v928
        %vm936 = vcmp.eq.s32.totalorder %v344, %v928
        %vm937 = vcmp.eq.s32.totalorder %v345, %v928
        %vm938 = vcmp.eq.s32.totalorder %v346, %v928
        %vm939 = vcmp.eq.s32.totalorder %v347, %v928
        %vm940 = vcmp.eq.s32.totalorder %v348, %v928
        %vm941 = vcmp.eq.s32.totalorder %v349, %v928
        %vm942 = vcmp.eq.s32.totalorder %v350, %v928
        %vm943 = vcmp.eq.s32.totalorder %v351, %v928
        %vm944 = vcmp.eq.s32.totalorder %v352, %v928
        %v945 = vsel %vm929, 1, 0
        %v946 = vsel %vm930, 1, 0
        %v947 = vsel %vm931, 1, 0
        %v948 = vsel %vm932, 1, 0
        %v949 = vsel %vm933, 1, 0
        %v950 = vsel %vm934, 1, 0
        %v951 = vsel %vm935, 1, 0
        %v952 = vsel %vm936, 1, 0
        %v953 = vsel %vm937, 1, 0
        %v954 = vsel %vm938, 1, 0
        %v955 = vsel %vm939, 1, 0
        %v956 = vsel %vm940, 1, 0
        %v957 = vsel %vm941, 1, 0
        %v958 = vsel %vm942, 1, 0
        %v959 = vsel %vm943, 1, 0
        %v960 = vsel %vm944, 1, 0
        %v961 = vcvt.s32.f32 %v945
        %v962 = vcvt.s32.f32 %v946
        %v963 = vcvt.s32.f32 %v947
        %v964 = vcvt.s32.f32 %v948
        %v965 = vcvt.s32.f32 %v949
        %v966 = vcvt.s32.f32 %v950
        %v967 = vcvt.s32.f32 %v951
        %v968 = vcvt.s32.f32 %v952
        %v969 = vcvt.s32.f32 %v953
        %v970 = vcvt.s32.f32 %v954
        %v971 = vcvt.s32.f32 %v955
        %v972 = vcvt.s32.f32 %v956
        %v973 = vcvt.s32.f32 %v957
        %v974 = vcvt.s32.f32 %v958
        %v975 = vcvt.s32.f32 %v959
        %v976 = vcvt.s32.f32 %v960
        %v977 = vlaneseq
        %v978 = vshrl.u32 %v977, 7
        %v979 = vsub.s32 3, %v978
        %v980 = vrot.slane %v335, %v979
        %vm981 = vcmp.eq.s32.totalorder %v337, %v980
        %vm982 = vcmp.eq.s32.totalorder %v338, %v980
        %vm983 = vcmp.eq.s32.totalorder %v339, %v980
        %vm984 = vcmp.eq.s32.totalorder %v340, %v980
        %vm985 = vcmp.eq.s32.totalorder %v341, %v980
        %vm986 = vcmp.eq.s32.totalorder %v342, %v980
        %vm987 = vcmp.eq.s32.totalorder %v343, %v980
        %vm988 = vcmp.eq.s32.totalorder %v344, %v980
        %vm989 = vcmp.eq.s32.totalorder %v345, %v980
        %vm990 = vcmp.eq.s32.totalorder %v346, %v980
        %vm991 = vcmp.eq.s32.totalorder %v347, %v980
        %vm992 = vcmp.eq.s32.totalorder %v348, %v980
        %vm993 = vcmp.eq.s32.totalorder %v349, %v980
        %vm994 = vcmp.eq.s32.totalorder %v350, %v980
        %vm995 = vcmp.eq.s32.totalorder %v351, %v980
        %vm996 = vcmp.eq.s32.totalorder %v352, %v980
        %v997 = vsel %vm981, 1, 0
        %v998 = vsel %vm982, 1, 0
        %v999 = vsel %vm983, 1, 0
        %v1000 = vsel %vm984, 1, 0
        %v1001 = vsel %vm985, 1, 0
        %v1002 = vsel %vm986, 1, 0
        %v1003 = vsel %vm987, 1, 0
        %v1004 = vsel %vm988, 1, 0
        %v1005 = vsel %vm989, 1, 0
        %v1006 = vsel %vm990, 1, 0
        %v1007 = vsel %vm991, 1, 0
        %v1008 = vsel %vm992, 1, 0
        %v1009 = vsel %vm993, 1, 0
        %v1010 = vsel %vm994, 1, 0
        %v1011 = vsel %vm995, 1, 0
        %v1012 = vsel %vm996, 1, 0
        %v1013 = vcvt.s32.f32 %v997
        %v1014 = vcvt.s32.f32 %v998
        %v1015 = vcvt.s32.f32 %v999
        %v1016 = vcvt.s32.f32 %v1000
        %v1017 = vcvt.s32.f32 %v1001
        %v1018 = vcvt.s32.f32 %v1002
        %v1019 = vcvt.s32.f32 %v1003
        %v1020 = vcvt.s32.f32 %v1004
        %v1021 = vcvt.s32.f32 %v1005
        %v1022 = vcvt.s32.f32 %v1006
        %v1023 = vcvt.s32.f32 %v1007
        %v1024 = vcvt.s32.f32 %v1008
        %v1025 = vcvt.s32.f32 %v1009
        %v1026 = vcvt.s32.f32 %v1010
        %v1027 = vcvt.s32.f32 %v1011
        %v1028 = vcvt.s32.f32 %v1012
        %v1029 = vsub.f32 %v961, %v1013
        %v1030 = vsub.f32 %v962, %v1014
        %v1031 = vsub.f32 %v963, %v1015
        %v1032 = vsub.f32 %v964, %v1016
        %v1033 = vsub.f32 %v965, %v1017
        %v1034 = vsub.f32 %v966, %v1018
        %v1035 = vsub.f32 %v967, %v1019
        %v1036 = vsub.f32 %v968, %v1020
        %v1037 = vsub.f32 %v969, %v1021
        %v1038 = vsub.f32 %v970, %v1022
        %v1039 = vsub.f32 %v971, %v1023
        %v1040 = vsub.f32 %v972, %v1024
        %v1041 = vsub.f32 %v973, %v1025
        %v1042 = vsub.f32 %v974, %v1026
        %v1043 = vsub.f32 %v975, %v1027
        %v1044 = vsub.f32 %v976, %v1028
        %1045 = vmatprep.subr.mxu0 0.0
        %1046 = vmatpush1.msra.mxu0 %v1029
        %1047 = vmatprep.subr.mxu0 0.0
        %1048 = vmatpush1.msra.mxu0 %v1030
        %1049 = vmatprep.subr.mxu0 0.0
        %1050 = vmatpush1.msra.mxu0 %v1031
        %1051 = vmatprep.subr.mxu0 0.0
        %1052 = vmatpush1.msra.mxu0 %v1032
        %1053 = vmatprep.subr.mxu0 0.0
        %1054 = vmatpush1.msra.mxu0 %v1033
        %1055 = vmatprep.subr.mxu0 0.0
        %1056 = vmatpush1.msra.mxu0 %v1034
        %1057 = vmatprep.subr.mxu0 0.0
        %1058 = vmatpush1.msra.mxu0 %v1035
        %1059 = vmatprep.subr.mxu0 0.0
        %1060 = vmatpush1.msra.mxu0 %v1036
        %1061 = vmatprep.subr.mxu0 0.0
        %1062 = vmatpush1.msra.mxu0 %v1037
        %1063 = vmatprep.subr.mxu0 0.0
        %1064 = vmatpush1.msra.mxu0 %v1038
        %1065 = vmatprep.subr.mxu0 0.0
        %1066 = vmatpush1.msra.mxu0 %v1039
        %1067 = vmatprep.subr.mxu0 0.0
        %1068 = vmatpush1.msra.mxu0 %v1040
        %1069 = vmatprep.subr.mxu0 0.0
        %1070 = vmatpush1.msra.mxu0 %v1041
        %1071 = vmatprep.subr.mxu0 0.0
        %1072 = vmatpush1.msra.mxu0 %v1042
        %1073 = vmatprep.subr.mxu0 0.0
        %1074 = vmatpush1.msra.mxu0 %v1043
        %1075 = vmatprep.subr.mxu0 0.0
        %1076 = vmatpush1.msra.mxu0 %v1044
        %1077 = vmatprep.subr.mxu0 0.0
        %1078 = vmatpush1.msra.mxu0 0.0
        %1079 = vmatprep.subr.mxu0 0.0
        %1080 = vmatpush1.msra.mxu0 0.0
        %1081 = vmatprep.subr.mxu0 0.0
        %1082 = vmatpush1.msra.mxu0 0.0
        %1083 = vmatprep.subr.mxu0 0.0
        %1084 = vmatpush1.msra.mxu0 0.0
        %1085 = vmatprep.subr.mxu0 0.0
        %1086 = vmatpush1.msra.mxu0 0.0
        %1087 = vmatprep.subr.mxu0 0.0
        %1088 = vmatpush1.msra.mxu0 0.0
        %1089 = vmatprep.subr.mxu0 0.0
        %1090 = vmatpush1.msra.mxu0 0.0
        %1091 = vmatprep.subr.mxu0 0.0
        %1092 = vmatpush1.msra.mxu0 0.0
        %1093 = vmatprep.subr.mxu0 0.0
        %1094 = vmatpush1.msra.mxu0 0.0
        %1095 = vmatprep.subr.mxu0 0.0
        %1096 = vmatpush1.msra.mxu0 0.0
        %1097 = vmatprep.subr.mxu0 0.0
        %1098 = vmatpush1.msra.mxu0 0.0
        %1099 = vmatprep.subr.mxu0 0.0
        %1100 = vmatpush1.msra.mxu0 0.0
        %1101 = vmatprep.subr.mxu0 0.0
        %1102 = vmatpush1.msra.mxu0 0.0
        %1103 = vmatprep.subr.mxu0 0.0
        %1104 = vmatpush1.msra.mxu0 0.0
        %1105 = vmatprep.subr.mxu0 0.0
        %1106 = vmatpush1.msra.mxu0 0.0
        %1107 = vmatprep.subr.mxu0 0.0
        %1108 = vmatpush1.msra.mxu0 0.0
        %1109 = vmatprep.mubr.f32.mxu0 0.0
        %1110 = vmatmul.mubr.f32.gmra.mrb[0].mxu0 %v333
        %v1111 = vpop.f32.mrb[0].mxu0
        %v1112 = vadd.f32 0.0, %v1111
        %v1113 = vpop.f32.mrb[0].mxu0
        %1114 = vdwg.mxu0
        %v1115 = vmax.f32 %v924, %v1112
        %v1116 = vlaneseq
        %v1117 = vshrl.u32 %v1116, 7
        %v1118 = vsub.s32 4, %v1117
        %v1119 = vrot.slane %v334, %v1118
        %vm1120 = vcmp.eq.s32.totalorder %v337, %v1119
        %vm1121 = vcmp.eq.s32.totalorder %v338, %v1119
        %vm1122 = vcmp.eq.s32.totalorder %v339, %v1119
        %vm1123 = vcmp.eq.s32.totalorder %v340, %v1119
        %vm1124 = vcmp.eq.s32.totalorder %v341, %v1119
        %vm1125 = vcmp.eq.s32.totalorder %v342, %v1119
        %vm1126 = vcmp.eq.s32.totalorder %v343, %v1119
        %vm1127 = vcmp.eq.s32.totalorder %v344, %v1119
        %vm1128 = vcmp.eq.s32.totalorder %v345, %v1119
        %vm1129 = vcmp.eq.s32.totalorder %v346, %v1119
        %vm1130 = vcmp.eq.s32.totalorder %v347, %v1119
        %vm1131 = vcmp.eq.s32.totalorder %v348, %v1119
        %vm1132 = vcmp.eq.s32.totalorder %v349, %v1119
        %vm1133 = vcmp.eq.s32.totalorder %v350, %v1119
        %vm1134 = vcmp.eq.s32.totalorder %v351, %v1119
        %vm1135 = vcmp.eq.s32.totalorder %v352, %v1119
        %v1136 = vsel %vm1120, 1, 0
        %v1137 = vsel %vm1121, 1, 0
        %v1138 = vsel %vm1122, 1, 0
        %v1139 = vsel %vm1123, 1, 0
        %v1140 = vsel %vm1124, 1, 0
        %v1141 = vsel %vm1125, 1, 0
        %v1142 = vsel %vm1126, 1, 0
        %v1143 = vsel %vm1127, 1, 0
        %v1144 = vsel %vm1128, 1, 0
        %v1145 = vsel %vm1129, 1, 0
        %v1146 = vsel %vm1130, 1, 0
        %v1147 = vsel %vm1131, 1, 0
        %v1148 = vsel %vm1132, 1, 0
        %v1149 = vsel %vm1133, 1, 0
        %v1150 = vsel %vm1134, 1, 0
        %v1151 = vsel %vm1135, 1, 0
        %v1152 = vcvt.s32.f32 %v1136
        %v1153 = vcvt.s32.f32 %v1137
        %v1154 = vcvt.s32.f32 %v1138
        %v1155 = vcvt.s32.f32 %v1139
        %v1156 = vcvt.s32.f32 %v1140
        %v1157 = vcvt.s32.f32 %v1141
        %v1158 = vcvt.s32.f32 %v1142
        %v1159 = vcvt.s32.f32 %v1143
        %v1160 = vcvt.s32.f32 %v1144
        %v1161 = vcvt.s32.f32 %v1145
        %v1162 = vcvt.s32.f32 %v1146
        %v1163 = vcvt.s32.f32 %v1147
        %v1164 = vcvt.s32.f32 %v1148
        %v1165 = vcvt.s32.f32 %v1149
        %v1166 = vcvt.s32.f32 %v1150
        %v1167 = vcvt.s32.f32 %v1151
        %v1168 = vlaneseq
        %v1169 = vshrl.u32 %v1168, 7
        %v1170 = vsub.s32 4, %v1169
        %v1171 = vrot.slane %v335, %v1170
        %vm1172 = vcmp.eq.s32.totalorder %v337, %v1171
        %vm1173 = vcmp.eq.s32.totalorder %v338, %v1171
        %vm1174 = vcmp.eq.s32.totalorder %v339, %v1171
        %vm1175 = vcmp.eq.s32.totalorder %v340, %v1171
        %vm1176 = vcmp.eq.s32.totalorder %v341, %v1171
        %vm1177 = vcmp.eq.s32.totalorder %v342, %v1171
        %vm1178 = vcmp.eq.s32.totalorder %v343, %v1171
        %vm1179 = vcmp.eq.s32.totalorder %v344, %v1171
        %vm1180 = vcmp.eq.s32.totalorder %v345, %v1171
        %vm1181 = vcmp.eq.s32.totalorder %v346, %v1171
        %vm1182 = vcmp.eq.s32.totalorder %v347, %v1171
        %vm1183 = vcmp.eq.s32.totalorder %v348, %v1171
        %vm1184 = vcmp.eq.s32.totalorder %v349, %v1171
        %vm1185 = vcmp.eq.s32.totalorder %v350, %v1171
        %vm1186 = vcmp.eq.s32.totalorder %v351, %v1171
        %vm1187 = vcmp.eq.s32.totalorder %v352, %v1171
        %v1188 = vsel %vm1172, 1, 0
        %v1189 = vsel %vm1173, 1, 0
        %v1190 = vsel %vm1174, 1, 0
        %v1191 = vsel %vm1175, 1, 0
        %v1192 = vsel %vm1176, 1, 0
        %v1193 = vsel %vm1177, 1, 0
        %v1194 = vsel %vm1178, 1, 0
        %v1195 = vsel %vm1179, 1, 0
        %v1196 = vsel %vm1180, 1, 0
        %v1197 = vsel %vm1181, 1, 0
        %v1198 = vsel %vm1182, 1, 0
        %v1199 = vsel %vm1183, 1, 0
        %v1200 = vsel %vm1184, 1, 0
        %v1201 = vsel %vm1185, 1, 0
        %v1202 = vsel %vm1186, 1, 0
        %v1203 = vsel %vm1187, 1, 0
        %v1204 = vcvt.s32.f32 %v1188
        %v1205 = vcvt.s32.f32 %v1189
        %v1206 = vcvt.s32.f32 %v1190
        %v1207 = vcvt.s32.f32 %v1191
        %v1208 = vcvt.s32.f32 %v1192
        %v1209 = vcvt.s32.f32 %v1193
        %v1210 = vcvt.s32.f32 %v1194
        %v1211 = vcvt.s32.f32 %v1195
        %v1212 = vcvt.s32.f32 %v1196
        %v1213 = vcvt.s32.f32 %v1197
        %v1214 = vcvt.s32.f32 %v1198
        %v1215 = vcvt.s32.f32 %v1199
        %v1216 = vcvt.s32.f32 %v1200
        %v1217 = vcvt.s32.f32 %v1201
        %v1218 = vcvt.s32.f32 %v1202
        %v1219 = vcvt.s32.f32 %v1203
        %v1220 = vsub.f32 %v1152, %v1204
        %v1221 = vsub.f32 %v1153, %v1205
        %v1222 = vsub.f32 %v1154, %v1206
        %v1223 = vsub.f32 %v1155, %v1207
        %v1224 = vsub.f32 %v1156, %v1208
        %v1225 = vsub.f32 %v1157, %v1209
        %v1226 = vsub.f32 %v1158, %v1210
        %v1227 = vsub.f32 %v1159, %v1211
        %v1228 = vsub.f32 %v1160, %v1212
        %v1229 = vsub.f32 %v1161, %v1213
        %v1230 = vsub.f32 %v1162, %v1214
        %v1231 = vsub.f32 %v1163, %v1215
        %v1232 = vsub.f32 %v1164, %v1216
        %v1233 = vsub.f32 %v1165, %v1217
        %v1234 = vsub.f32 %v1166, %v1218
        %v1235 = vsub.f32 %v1167, %v1219
        %1236 = vmatprep.subr.mxu0 0.0
        %1237 = vmatpush1.msra.mxu0 %v1220
        %1238 = vmatprep.subr.mxu0 0.0
        %1239 = vmatpush1.msra.mxu0 %v1221
        %1240 = vmatprep.subr.mxu0 0.0
        %1241 = vmatpush1.msra.mxu0 %v1222
        %1242 = vmatprep.subr.mxu0 0.0
        %1243 = vmatpush1.msra.mxu0 %v1223
        %1244 = vmatprep.subr.mxu0 0.0
        %1245 = vmatpush1.msra.mxu0 %v1224
        %1246 = vmatprep.subr.mxu0 0.0
        %1247 = vmatpush1.msra.mxu0 %v1225
        %1248 = vmatprep.subr.mxu0 0.0
        %1249 = vmatpush1.msra.mxu0 %v1226
        %1250 = vmatprep.subr.mxu0 0.0
        %1251 = vmatpush1.msra.mxu0 %v1227
        %1252 = vmatprep.subr.mxu0 0.0
        %1253 = vmatpush1.msra.mxu0 %v1228
        %1254 = vmatprep.subr.mxu0 0.0
        %1255 = vmatpush1.msra.mxu0 %v1229
        %1256 = vmatprep.subr.mxu0 0.0
        %1257 = vmatpush1.msra.mxu0 %v1230
        %1258 = vmatprep.subr.mxu0 0.0
        %1259 = vmatpush1.msra.mxu0 %v1231
        %1260 = vmatprep.subr.mxu0 0.0
        %1261 = vmatpush1.msra.mxu0 %v1232
        %1262 = vmatprep.subr.mxu0 0.0
        %1263 = vmatpush1.msra.mxu0 %v1233
        %1264 = vmatprep.subr.mxu0 0.0
        %1265 = vmatpush1.msra.mxu0 %v1234
        %1266 = vmatprep.subr.mxu0 0.0
        %1267 = vmatpush1.msra.mxu0 %v1235
        %1268 = vmatprep.subr.mxu0 0.0
        %1269 = vmatpush1.msra.mxu0 0.0
        %1270 = vmatprep.subr.mxu0 0.0
        %1271 = vmatpush1.msra.mxu0 0.0
        %1272 = vmatprep.subr.mxu0 0.0
        %1273 = vmatpush1.msra.mxu0 0.0
        %1274 = vmatprep.subr.mxu0 0.0
        %1275 = vmatpush1.msra.mxu0 0.0
        %1276 = vmatprep.subr.mxu0 0.0
        %1277 = vmatpush1.msra.mxu0 0.0
        %1278 = vmatprep.subr.mxu0 0.0
        %1279 = vmatpush1.msra.mxu0 0.0
        %1280 = vmatprep.subr.mxu0 0.0
        %1281 = vmatpush1.msra.mxu0 0.0
        %1282 = vmatprep.subr.mxu0 0.0
        %1283 = vmatpush1.msra.mxu0 0.0
        %1284 = vmatprep.subr.mxu0 0.0
        %1285 = vmatpush1.msra.mxu0 0.0
        %1286 = vmatprep.subr.mxu0 0.0
        %1287 = vmatpush1.msra.mxu0 0.0
        %1288 = vmatprep.subr.mxu0 0.0
        %1289 = vmatpush1.msra.mxu0 0.0
        %1290 = vmatprep.subr.mxu0 0.0
        %1291 = vmatpush1.msra.mxu0 0.0
        %1292 = vmatprep.subr.mxu0 0.0
        %1293 = vmatpush1.msra.mxu0 0.0
        %1294 = vmatprep.subr.mxu0 0.0
        %1295 = vmatpush1.msra.mxu0 0.0
        %1296 = vmatprep.subr.mxu0 0.0
        %1297 = vmatpush1.msra.mxu0 0.0
        %1298 = vmatprep.subr.mxu0 0.0
        %1299 = vmatpush1.msra.mxu0 0.0
        %1300 = vmatprep.mubr.f32.mxu0 0.0
        %1301 = vmatmul.mubr.f32.gmra.mrb[0].mxu0 %v333
        %v1302 = vpop.f32.mrb[0].mxu0
        %v1303 = vadd.f32 0.0, %v1302
        %v1304 = vpop.f32.mrb[0].mxu0
        %1305 = vdwg.mxu0
        %v1306 = vmax.f32 %v1115, %v1303
        %v1307 = vlaneseq
        %v1308 = vshrl.u32 %v1307, 7
        %v1309 = vsub.s32 5, %v1308
        %v1310 = vrot.slane %v334, %v1309
        %vm1311 = vcmp.eq.s32.totalorder %v337, %v1310
        %vm1312 = vcmp.eq.s32.totalorder %v338, %v1310
        %vm1313 = vcmp.eq.s32.totalorder %v339, %v1310
        %vm1314 = vcmp.eq.s32.totalorder %v340, %v1310
        %vm1315 = vcmp.eq.s32.totalorder %v341, %v1310
        %vm1316 = vcmp.eq.s32.totalorder %v342, %v1310
        %vm1317 = vcmp.eq.s32.totalorder %v343, %v1310
        %vm1318 = vcmp.eq.s32.totalorder %v344, %v1310
        %vm1319 = vcmp.eq.s32.totalorder %v345, %v1310
        %vm1320 = vcmp.eq.s32.totalorder %v346, %v1310
        %vm1321 = vcmp.eq.s32.totalorder %v347, %v1310
        %vm1322 = vcmp.eq.s32.totalorder %v348, %v1310
        %vm1323 = vcmp.eq.s32.totalorder %v349, %v1310
        %vm1324 = vcmp.eq.s32.totalorder %v350, %v1310
        %vm1325 = vcmp.eq.s32.totalorder %v351, %v1310
        %vm1326 = vcmp.eq.s32.totalorder %v352, %v1310
        %v1327 = vsel %vm1311, 1, 0
        %v1328 = vsel %vm1312, 1, 0
        %v1329 = vsel %vm1313, 1, 0
        %v1330 = vsel %vm1314, 1, 0
        %v1331 = vsel %vm1315, 1, 0
        %v1332 = vsel %vm1316, 1, 0
        %v1333 = vsel %vm1317, 1, 0
        %v1334 = vsel %vm1318, 1, 0
        %v1335 = vsel %vm1319, 1, 0
        %v1336 = vsel %vm1320, 1, 0
        %v1337 = vsel %vm1321, 1, 0
        %v1338 = vsel %vm1322, 1, 0
        %v1339 = vsel %vm1323, 1, 0
        %v1340 = vsel %vm1324, 1, 0
        %v1341 = vsel %vm1325, 1, 0
        %v1342 = vsel %vm1326, 1, 0
        %v1343 = vcvt.s32.f32 %v1327
        %v1344 = vcvt.s32.f32 %v1328
        %v1345 = vcvt.s32.f32 %v1329
        %v1346 = vcvt.s32.f32 %v1330
        %v1347 = vcvt.s32.f32 %v1331
        %v1348 = vcvt.s32.f32 %v1332
        %v1349 = vcvt.s32.f32 %v1333
        %v1350 = vcvt.s32.f32 %v1334
        %v1351 = vcvt.s32.f32 %v1335
        %v1352 = vcvt.s32.f32 %v1336
        %v1353 = vcvt.s32.f32 %v1337
        %v1354 = vcvt.s32.f32 %v1338
        %v1355 = vcvt.s32.f32 %v1339
        %v1356 = vcvt.s32.f32 %v1340
        %v1357 = vcvt.s32.f32 %v1341
        %v1358 = vcvt.s32.f32 %v1342
        %v1359 = vlaneseq
        %v1360 = vshrl.u32 %v1359, 7
        %v1361 = vsub.s32 5, %v1360
        %v1362 = vrot.slane %v335, %v1361
        %vm1363 = vcmp.eq.s32.totalorder %v337, %v1362
        %vm1364 = vcmp.eq.s32.totalorder %v338, %v1362
        %vm1365 = vcmp.eq.s32.totalorder %v339, %v1362
        %vm1366 = vcmp.eq.s32.totalorder %v340, %v1362
        %vm1367 = vcmp.eq.s32.totalorder %v341, %v1362
        %vm1368 = vcmp.eq.s32.totalorder %v342, %v1362
        %vm1369 = vcmp.eq.s32.totalorder %v343, %v1362
        %vm1370 = vcmp.eq.s32.totalorder %v344, %v1362
        %vm1371 = vcmp.eq.s32.totalorder %v345, %v1362
        %vm1372 = vcmp.eq.s32.totalorder %v346, %v1362
        %vm1373 = vcmp.eq.s32.totalorder %v347, %v1362
        %vm1374 = vcmp.eq.s32.totalorder %v348, %v1362
        %vm1375 = vcmp.eq.s32.totalorder %v349, %v1362
        %vm1376 = vcmp.eq.s32.totalorder %v350, %v1362
        %vm1377 = vcmp.eq.s32.totalorder %v351, %v1362
        %vm1378 = vcmp.eq.s32.totalorder %v352, %v1362
        %v1379 = vsel %vm1363, 1, 0
        %v1380 = vsel %vm1364, 1, 0
        %v1381 = vsel %vm1365, 1, 0
        %v1382 = vsel %vm1366, 1, 0
        %v1383 = vsel %vm1367, 1, 0
        %v1384 = vsel %vm1368, 1, 0
        %v1385 = vsel %vm1369, 1, 0
        %v1386 = vsel %vm1370, 1, 0
        %v1387 = vsel %vm1371, 1, 0
        %v1388 = vsel %vm1372, 1, 0
        %v1389 = vsel %vm1373, 1, 0
        %v1390 = vsel %vm1374, 1, 0
        %v1391 = vsel %vm1375, 1, 0
        %v1392 = vsel %vm1376, 1, 0
        %v1393 = vsel %vm1377, 1, 0
        %v1394 = vsel %vm1378, 1, 0
        %v1395 = vcvt.s32.f32 %v1379
        %v1396 = vcvt.s32.f32 %v1380
        %v1397 = vcvt.s32.f32 %v1381
        %v1398 = vcvt.s32.f32 %v1382
        %v1399 = vcvt.s32.f32 %v1383
        %v1400 = vcvt.s32.f32 %v1384
        %v1401 = vcvt.s32.f32 %v1385
        %v1402 = vcvt.s32.f32 %v1386
        %v1403 = vcvt.s32.f32 %v1387
        %v1404 = vcvt.s32.f32 %v1388
        %v1405 = vcvt.s32.f32 %v1389
        %v1406 = vcvt.s32.f32 %v1390
        %v1407 = vcvt.s32.f32 %v1391
        %v1408 = vcvt.s32.f32 %v1392
        %v1409 = vcvt.s32.f32 %v1393
        %v1410 = vcvt.s32.f32 %v1394
        %v1411 = vsub.f32 %v1343, %v1395
        %v1412 = vsub.f32 %v1344, %v1396
        %v1413 = vsub.f32 %v1345, %v1397
        %v1414 = vsub.f32 %v1346, %v1398
        %v1415 = vsub.f32 %v1347, %v1399
        %v1416 = vsub.f32 %v1348, %v1400
        %v1417 = vsub.f32 %v1349, %v1401
        %v1418 = vsub.f32 %v1350, %v1402
        %v1419 = vsub.f32 %v1351, %v1403
        %v1420 = vsub.f32 %v1352, %v1404
        %v1421 = vsub.f32 %v1353, %v1405
        %v1422 = vsub.f32 %v1354, %v1406
        %v1423 = vsub.f32 %v1355, %v1407
        %v1424 = vsub.f32 %v1356, %v1408
        %v1425 = vsub.f32 %v1357, %v1409
        %v1426 = vsub.f32 %v1358, %v1410
        %1427 = vmatprep.subr.mxu0 0.0
        %1428 = vmatpush1.msra.mxu0 %v1411
        %1429 = vmatprep.subr.mxu0 0.0
        %1430 = vmatpush1.msra.mxu0 %v1412
        %1431 = vmatprep.subr.mxu0 0.0
        %1432 = vmatpush1.msra.mxu0 %v1413
        %1433 = vmatprep.subr.mxu0 0.0
        %1434 = vmatpush1.msra.mxu0 %v1414
        %1435 = vmatprep.subr.mxu0 0.0
        %1436 = vmatpush1.msra.mxu0 %v1415
        %1437 = vmatprep.subr.mxu0 0.0
        %1438 = vmatpush1.msra.mxu0 %v1416
        %1439 = vmatprep.subr.mxu0 0.0
        %1440 = vmatpush1.msra.mxu0 %v1417
        %1441 = vmatprep.subr.mxu0 0.0
        %1442 = vmatpush1.msra.mxu0 %v1418
        %1443 = vmatprep.subr.mxu0 0.0
        %1444 = vmatpush1.msra.mxu0 %v1419
        %1445 = vmatprep.subr.mxu0 0.0
        %1446 = vmatpush1.msra.mxu0 %v1420
        %1447 = vmatprep.subr.mxu0 0.0
        %1448 = vmatpush1.msra.mxu0 %v1421
        %1449 = vmatprep.subr.mxu0 0.0
        %1450 = vmatpush1.msra.mxu0 %v1422
        %1451 = vmatprep.subr.mxu0 0.0
        %1452 = vmatpush1.msra.mxu0 %v1423
        %1453 = vmatprep.subr.mxu0 0.0
        %1454 = vmatpush1.msra.mxu0 %v1424
        %1455 = vmatprep.subr.mxu0 0.0
        %1456 = vmatpush1.msra.mxu0 %v1425
        %1457 = vmatprep.subr.mxu0 0.0
        %1458 = vmatpush1.msra.mxu0 %v1426
        %1459 = vmatprep.subr.mxu0 0.0
        %1460 = vmatpush1.msra.mxu0 0.0
        %1461 = vmatprep.subr.mxu0 0.0
        %1462 = vmatpush1.msra.mxu0 0.0
        %1463 = vmatprep.subr.mxu0 0.0
        %1464 = vmatpush1.msra.mxu0 0.0
        %1465 = vmatprep.subr.mxu0 0.0
        %1466 = vmatpush1.msra.mxu0 0.0
        %1467 = vmatprep.subr.mxu0 0.0
        %1468 = vmatpush1.msra.mxu0 0.0
        %1469 = vmatprep.subr.mxu0 0.0
        %1470 = vmatpush1.msra.mxu0 0.0
        %1471 = vmatprep.subr.mxu0 0.0
        %1472 = vmatpush1.msra.mxu0 0.0
        %1473 = vmatprep.subr.mxu0 0.0
        %1474 = vmatpush1.msra.mxu0 0.0
        %1475 = vmatprep.subr.mxu0 0.0
        %1476 = vmatpush1.msra.mxu0 0.0
        %1477 = vmatprep.subr.mxu0 0.0
        %1478 = vmatpush1.msra.mxu0 0.0
        %1479 = vmatprep.subr.mxu0 0.0
        %1480 = vmatpush1.msra.mxu0 0.0
        %1481 = vmatprep.subr.mxu0 0.0
        %1482 = vmatpush1.msra.mxu0 0.0
        %1483 = vmatprep.subr.mxu0 0.0
        %1484 = vmatpush1.msra.mxu0 0.0
        %1485 = vmatprep.subr.mxu0 0.0
        %1486 = vmatpush1.msra.mxu0 0.0
        %1487 = vmatprep.subr.mxu0 0.0
        %1488 = vmatpush1.msra.mxu0 0.0
        %1489 = vmatprep.subr.mxu0 0.0
        %1490 = vmatpush1.msra.mxu0 0.0
        %1491 = vmatprep.mubr.f32.mxu0 0.0
        %1492 = vmatmul.mubr.f32.gmra.mrb[0].mxu0 %v333
        %v1493 = vpop.f32.mrb[0].mxu0
        %v1494 = vadd.f32 0.0, %v1493
        %v1495 = vpop.f32.mrb[0].mxu0
        %1496 = vdwg.mxu0
        %v1497 = vmax.f32 %v1306, %v1494
        %v1498 = vlaneseq
        %v1499 = vshrl.u32 %v1498, 7
        %v1500 = vsub.s32 6, %v1499
        %v1501 = vrot.slane %v334, %v1500
        %vm1502 = vcmp.eq.s32.totalorder %v337, %v1501
        %vm1503 = vcmp.eq.s32.totalorder %v338, %v1501
        %vm1504 = vcmp.eq.s32.totalorder %v339, %v1501
        %vm1505 = vcmp.eq.s32.totalorder %v340, %v1501
        %vm1506 = vcmp.eq.s32.totalorder %v341, %v1501
        %vm1507 = vcmp.eq.s32.totalorder %v342, %v1501
        %vm1508 = vcmp.eq.s32.totalorder %v343, %v1501
        %vm1509 = vcmp.eq.s32.totalorder %v344, %v1501
        %vm1510 = vcmp.eq.s32.totalorder %v345, %v1501
        %vm1511 = vcmp.eq.s32.totalorder %v346, %v1501
        %vm1512 = vcmp.eq.s32.totalorder %v347, %v1501
        %vm1513 = vcmp.eq.s32.totalorder %v348, %v1501
        %vm1514 = vcmp.eq.s32.totalorder %v349, %v1501
        %vm1515 = vcmp.eq.s32.totalorder %v350, %v1501
        %vm1516 = vcmp.eq.s32.totalorder %v351, %v1501
        %vm1517 = vcmp.eq.s32.totalorder %v352, %v1501
        %v1518 = vsel %vm1502, 1, 0
        %v1519 = vsel %vm1503, 1, 0
        %v1520 = vsel %vm1504, 1, 0
        %v1521 = vsel %vm1505, 1, 0
        %v1522 = vsel %vm1506, 1, 0
        %v1523 = vsel %vm1507, 1, 0
        %v1524 = vsel %vm1508, 1, 0
        %v1525 = vsel %vm1509, 1, 0
        %v1526 = vsel %vm1510, 1, 0
        %v1527 = vsel %vm1511, 1, 0
        %v1528 = vsel %vm1512, 1, 0
        %v1529 = vsel %vm1513, 1, 0
        %v1530 = vsel %vm1514, 1, 0
        %v1531 = vsel %vm1515, 1, 0
        %v1532 = vsel %vm1516, 1, 0
        %v1533 = vsel %vm1517, 1, 0
        %v1534 = vcvt.s32.f32 %v1518
        %v1535 = vcvt.s32.f32 %v1519
        %v1536 = vcvt.s32.f32 %v1520
        %v1537 = vcvt.s32.f32 %v1521
        %v1538 = vcvt.s32.f32 %v1522
        %v1539 = vcvt.s32.f32 %v1523
        %v1540 = vcvt.s32.f32 %v1524
        %v1541 = vcvt.s32.f32 %v1525
        %v1542 = vcvt.s32.f32 %v1526
        %v1543 = vcvt.s32.f32 %v1527
        %v1544 = vcvt.s32.f32 %v1528
        %v1545 = vcvt.s32.f32 %v1529
        %v1546 = vcvt.s32.f32 %v1530
        %v1547 = vcvt.s32.f32 %v1531
        %v1548 = vcvt.s32.f32 %v1532
        %v1549 = vcvt.s32.f32 %v1533
        %v1550 = vlaneseq
        %v1551 = vshrl.u32 %v1550, 7
        %v1552 = vsub.s32 6, %v1551
        %v1553 = vrot.slane %v335, %v1552
        %vm1554 = vcmp.eq.s32.totalorder %v337, %v1553
        %vm1555 = vcmp.eq.s32.totalorder %v338, %v1553
        %vm1556 = vcmp.eq.s32.totalorder %v339, %v1553
        %vm1557 = vcmp.eq.s32.totalorder %v340, %v1553
        %vm1558 = vcmp.eq.s32.totalorder %v341, %v1553
        %vm1559 = vcmp.eq.s32.totalorder %v342, %v1553
        %vm1560 = vcmp.eq.s32.totalorder %v343, %v1553
        %vm1561 = vcmp.eq.s32.totalorder %v344, %v1553
        %vm1562 = vcmp.eq.s32.totalorder %v345, %v1553
        %vm1563 = vcmp.eq.s32.totalorder %v346, %v1553
        %vm1564 = vcmp.eq.s32.totalorder %v347, %v1553
        %vm1565 = vcmp.eq.s32.totalorder %v348, %v1553
        %vm1566 = vcmp.eq.s32.totalorder %v349, %v1553
        %vm1567 = vcmp.eq.s32.totalorder %v350, %v1553
        %vm1568 = vcmp.eq.s32.totalorder %v351, %v1553
        %vm1569 = vcmp.eq.s32.totalorder %v352, %v1553
        %v1570 = vsel %vm1554, 1, 0
        %v1571 = vsel %vm1555, 1, 0
        %v1572 = vsel %vm1556, 1, 0
        %v1573 = vsel %vm1557, 1, 0
        %v1574 = vsel %vm1558, 1, 0
        %v1575 = vsel %vm1559, 1, 0
        %v1576 = vsel %vm1560, 1, 0
        %v1577 = vsel %vm1561, 1, 0
        %v1578 = vsel %vm1562, 1, 0
        %v1579 = vsel %vm1563, 1, 0
        %v1580 = vsel %vm1564, 1, 0
        %v1581 = vsel %vm1565, 1, 0
        %v1582 = vsel %vm1566, 1, 0
        %v1583 = vsel %vm1567, 1, 0
        %v1584 = vsel %vm1568, 1, 0
        %v1585 = vsel %vm1569, 1, 0
        %v1586 = vcvt.s32.f32 %v1570
        %v1587 = vcvt.s32.f32 %v1571
        %v1588 = vcvt.s32.f32 %v1572
        %v1589 = vcvt.s32.f32 %v1573
        %v1590 = vcvt.s32.f32 %v1574
        %v1591 = vcvt.s32.f32 %v1575
        %v1592 = vcvt.s32.f32 %v1576
        %v1593 = vcvt.s32.f32 %v1577
        %v1594 = vcvt.s32.f32 %v1578
        %v1595 = vcvt.s32.f32 %v1579
        %v1596 = vcvt.s32.f32 %v1580
        %v1597 = vcvt.s32.f32 %v1581
        %v1598 = vcvt.s32.f32 %v1582
        %v1599 = vcvt.s32.f32 %v1583
        %v1600 = vcvt.s32.f32 %v1584
        %v1601 = vcvt.s32.f32 %v1585
        %v1602 = vsub.f32 %v1534, %v1586
        %v1603 = vsub.f32 %v1535, %v1587
        %v1604 = vsub.f32 %v1536, %v1588
        %v1605 = vsub.f32 %v1537, %v1589
        %v1606 = vsub.f32 %v1538, %v1590
        %v1607 = vsub.f32 %v1539, %v1591
        %v1608 = vsub.f32 %v1540, %v1592
        %v1609 = vsub.f32 %v1541, %v1593
        %v1610 = vsub.f32 %v1542, %v1594
        %v1611 = vsub.f32 %v1543, %v1595
        %v1612 = vsub.f32 %v1544, %v1596
        %v1613 = vsub.f32 %v1545, %v1597
        %v1614 = vsub.f32 %v1546, %v1598
        %v1615 = vsub.f32 %v1547, %v1599
        %v1616 = vsub.f32 %v1548, %v1600
        %v1617 = vsub.f32 %v1549, %v1601
        %1618 = vmatprep.subr.mxu0 0.0
        %1619 = vmatpush1.msra.mxu0 %v1602
        %1620 = vmatprep.subr.mxu0 0.0
        %1621 = vmatpush1.msra.mxu0 %v1603
        %1622 = vmatprep.subr.mxu0 0.0
        %1623 = vmatpush1.msra.mxu0 %v1604
        %1624 = vmatprep.subr.mxu0 0.0
        %1625 = vmatpush1.msra.mxu0 %v1605
        %1626 = vmatprep.subr.mxu0 0.0
        %1627 = vmatpush1.msra.mxu0 %v1606
        %1628 = vmatprep.subr.mxu0 0.0
        %1629 = vmatpush1.msra.mxu0 %v1607
        %1630 = vmatprep.subr.mxu0 0.0
        %1631 = vmatpush1.msra.mxu0 %v1608
        %1632 = vmatprep.subr.mxu0 0.0
        %1633 = vmatpush1.msra.mxu0 %v1609
        %1634 = vmatprep.subr.mxu0 0.0
        %1635 = vmatpush1.msra.mxu0 %v1610
        %1636 = vmatprep.subr.mxu0 0.0
        %1637 = vmatpush1.msra.mxu0 %v1611
        %1638 = vmatprep.subr.mxu0 0.0
        %1639 = vmatpush1.msra.mxu0 %v1612
        %1640 = vmatprep.subr.mxu0 0.0
        %1641 = vmatpush1.msra.mxu0 %v1613
        %1642 = vmatprep.subr.mxu0 0.0
        %1643 = vmatpush1.msra.mxu0 %v1614
        %1644 = vmatprep.subr.mxu0 0.0
        %1645 = vmatpush1.msra.mxu0 %v1615
        %1646 = vmatprep.subr.mxu0 0.0
        %1647 = vmatpush1.msra.mxu0 %v1616
        %1648 = vmatprep.subr.mxu0 0.0
        %1649 = vmatpush1.msra.mxu0 %v1617
        %1650 = vmatprep.subr.mxu0 0.0
        %1651 = vmatpush1.msra.mxu0 0.0
        %1652 = vmatprep.subr.mxu0 0.0
        %1653 = vmatpush1.msra.mxu0 0.0
        %1654 = vmatprep.subr.mxu0 0.0
        %1655 = vmatpush1.msra.mxu0 0.0
        %1656 = vmatprep.subr.mxu0 0.0
        %1657 = vmatpush1.msra.mxu0 0.0
        %1658 = vmatprep.subr.mxu0 0.0
        %1659 = vmatpush1.msra.mxu0 0.0
        %1660 = vmatprep.subr.mxu0 0.0
        %1661 = vmatpush1.msra.mxu0 0.0
        %1662 = vmatprep.subr.mxu0 0.0
        %1663 = vmatpush1.msra.mxu0 0.0
        %1664 = vmatprep.subr.mxu0 0.0
        %1665 = vmatpush1.msra.mxu0 0.0
        %1666 = vmatprep.subr.mxu0 0.0
        %1667 = vmatpush1.msra.mxu0 0.0
        %1668 = vmatprep.subr.mxu0 0.0
        %1669 = vmatpush1.msra.mxu0 0.0
        %1670 = vmatprep.subr.mxu0 0.0
        %1671 = vmatpush1.msra.mxu0 0.0
        %1672 = vmatprep.subr.mxu0 0.0
        %1673 = vmatpush1.msra.mxu0 0.0
        %1674 = vmatprep.subr.mxu0 0.0
        %1675 = vmatpush1.msra.mxu0 0.0
        %1676 = vmatprep.subr.mxu0 0.0
        %1677 = vmatpush1.msra.mxu0 0.0
        %1678 = vmatprep.subr.mxu0 0.0
        %1679 = vmatpush1.msra.mxu0 0.0
        %1680 = vmatprep.subr.mxu0 0.0
        %1681 = vmatpush1.msra.mxu0 0.0
        %1682 = vmatprep.mubr.f32.mxu0 0.0
        %1683 = vmatmul.mubr.f32.gmra.mrb[0].mxu0 %v333
        %v1684 = vpop.f32.mrb[0].mxu0
        %v1685 = vadd.f32 0.0, %v1684
        %v1686 = vpop.f32.mrb[0].mxu0
        %1687 = vdwg.mxu0
        %v1688 = vmax.f32 %v1497, %v1685
        %v1689 = vlaneseq
        %v1690 = vshrl.u32 %v1689, 7
        %v1691 = vsub.s32 7, %v1690
        %v1692 = vrot.slane %v334, %v1691
        %vm1693 = vcmp.eq.s32.totalorder %v337, %v1692
        %vm1694 = vcmp.eq.s32.totalorder %v338, %v1692
        %vm1695 = vcmp.eq.s32.totalorder %v339, %v1692
        %vm1696 = vcmp.eq.s32.totalorder %v340, %v1692
        %vm1697 = vcmp.eq.s32.totalorder %v341, %v1692
        %vm1698 = vcmp.eq.s32.totalorder %v342, %v1692
        %vm1699 = vcmp.eq.s32.totalorder %v343, %v1692
        %vm1700 = vcmp.eq.s32.totalorder %v344, %v1692
        %vm1701 = vcmp.eq.s32.totalorder %v345, %v1692
        %vm1702 = vcmp.eq.s32.totalorder %v346, %v1692
        %vm1703 = vcmp.eq.s32.totalorder %v347, %v1692
        %vm1704 = vcmp.eq.s32.totalorder %v348, %v1692
        %vm1705 = vcmp.eq.s32.totalorder %v349, %v1692
        %vm1706 = vcmp.eq.s32.totalorder %v350, %v1692
        %vm1707 = vcmp.eq.s32.totalorder %v351, %v1692
        %vm1708 = vcmp.eq.s32.totalorder %v352, %v1692
        %v1709 = vsel %vm1693, 1, 0
        %v1710 = vsel %vm1694, 1, 0
        %v1711 = vsel %vm1695, 1, 0
        %v1712 = vsel %vm1696, 1, 0
        %v1713 = vsel %vm1697, 1, 0
        %v1714 = vsel %vm1698, 1, 0
        %v1715 = vsel %vm1699, 1, 0
        %v1716 = vsel %vm1700, 1, 0
        %v1717 = vsel %vm1701, 1, 0
        %v1718 = vsel %vm1702, 1, 0
        %v1719 = vsel %vm1703, 1, 0
        %v1720 = vsel %vm1704, 1, 0
        %v1721 = vsel %vm1705, 1, 0
        %v1722 = vsel %vm1706, 1, 0
        %v1723 = vsel %vm1707, 1, 0
        %v1724 = vsel %vm1708, 1, 0
        %v1725 = vcvt.s32.f32 %v1709
        %v1726 = vcvt.s32.f32 %v1710
        %v1727 = vcvt.s32.f32 %v1711
        %v1728 = vcvt.s32.f32 %v1712
        %v1729 = vcvt.s32.f32 %v1713
        %v1730 = vcvt.s32.f32 %v1714
        %v1731 = vcvt.s32.f32 %v1715
        %v1732 = vcvt.s32.f32 %v1716
        %v1733 = vcvt.s32.f32 %v1717
        %v1734 = vcvt.s32.f32 %v1718
        %v1735 = vcvt.s32.f32 %v1719
        %v1736 = vcvt.s32.f32 %v1720
        %v1737 = vcvt.s32.f32 %v1721
        %v1738 = vcvt.s32.f32 %v1722
        %v1739 = vcvt.s32.f32 %v1723
        %v1740 = vcvt.s32.f32 %v1724
        %v1741 = vlaneseq
        %v1742 = vshrl.u32 %v1741, 7
        %v1743 = vsub.s32 7, %v1742
        %v1744 = vrot.slane %v335, %v1743
        %vm1745 = vcmp.eq.s32.totalorder %v337, %v1744
        %vm1746 = vcmp.eq.s32.totalorder %v338, %v1744
        %vm1747 = vcmp.eq.s32.totalorder %v339, %v1744
        %vm1748 = vcmp.eq.s32.totalorder %v340, %v1744
        %vm1749 = vcmp.eq.s32.totalorder %v341, %v1744
        %vm1750 = vcmp.eq.s32.totalorder %v342, %v1744
        %vm1751 = vcmp.eq.s32.totalorder %v343, %v1744
        %vm1752 = vcmp.eq.s32.totalorder %v344, %v1744
        %vm1753 = vcmp.eq.s32.totalorder %v345, %v1744
        %vm1754 = vcmp.eq.s32.totalorder %v346, %v1744
        %vm1755 = vcmp.eq.s32.totalorder %v347, %v1744
        %vm1756 = vcmp.eq.s32.totalorder %v348, %v1744
        %vm1757 = vcmp.eq.s32.totalorder %v349, %v1744
        %vm1758 = vcmp.eq.s32.totalorder %v350, %v1744
        %vm1759 = vcmp.eq.s32.totalorder %v351, %v1744
        %vm1760 = vcmp.eq.s32.totalorder %v352, %v1744
        %v1761 = vsel %vm1745, 1, 0
        %v1762 = vsel %vm1746, 1, 0
        %v1763 = vsel %vm1747, 1, 0
        %v1764 = vsel %vm1748, 1, 0
        %v1765 = vsel %vm1749, 1, 0
        %v1766 = vsel %vm1750, 1, 0
        %v1767 = vsel %vm1751, 1, 0
        %v1768 = vsel %vm1752, 1, 0
        %v1769 = vsel %vm1753, 1, 0
        %v1770 = vsel %vm1754, 1, 0
        %v1771 = vsel %vm1755, 1, 0
        %v1772 = vsel %vm1756, 1, 0
        %v1773 = vsel %vm1757, 1, 0
        %v1774 = vsel %vm1758, 1, 0
        %v1775 = vsel %vm1759, 1, 0
        %v1776 = vsel %vm1760, 1, 0
        %v1777 = vcvt.s32.f32 %v1761
        %v1778 = vcvt.s32.f32 %v1762
        %v1779 = vcvt.s32.f32 %v1763
        %v1780 = vcvt.s32.f32 %v1764
        %v1781 = vcvt.s32.f32 %v1765
        %v1782 = vcvt.s32.f32 %v1766
        %v1783 = vcvt.s32.f32 %v1767
        %v1784 = vcvt.s32.f32 %v1768
        %v1785 = vcvt.s32.f32 %v1769
        %v1786 = vcvt.s32.f32 %v1770
        %v1787 = vcvt.s32.f32 %v1771
        %v1788 = vcvt.s32.f32 %v1772
        %v1789 = vcvt.s32.f32 %v1773
        %v1790 = vcvt.s32.f32 %v1774
        %v1791 = vcvt.s32.f32 %v1775
        %v1792 = vcvt.s32.f32 %v1776
        %v1793 = vsub.f32 %v1725, %v1777
        %v1794 = vsub.f32 %v1726, %v1778
        %v1795 = vsub.f32 %v1727, %v1779
        %v1796 = vsub.f32 %v1728, %v1780
        %v1797 = vsub.f32 %v1729, %v1781
        %v1798 = vsub.f32 %v1730, %v1782
        %v1799 = vsub.f32 %v1731, %v1783
        %v1800 = vsub.f32 %v1732, %v1784
        %v1801 = vsub.f32 %v1733, %v1785
        %v1802 = vsub.f32 %v1734, %v1786
        %v1803 = vsub.f32 %v1735, %v1787
        %v1804 = vsub.f32 %v1736, %v1788
        %v1805 = vsub.f32 %v1737, %v1789
        %v1806 = vsub.f32 %v1738, %v1790
        %v1807 = vsub.f32 %v1739, %v1791
        %v1808 = vsub.f32 %v1740, %v1792
        %1809 = vmatprep.subr.mxu0 0.0
        %1810 = vmatpush1.msra.mxu0 %v1793
        %1811 = vmatprep.subr.mxu0 0.0
        %1812 = vmatpush1.msra.mxu0 %v1794
        %1813 = vmatprep.subr.mxu0 0.0
        %1814 = vmatpush1.msra.mxu0 %v1795
        %1815 = vmatprep.subr.mxu0 0.0
        %1816 = vmatpush1.msra.mxu0 %v1796
        %1817 = vmatprep.subr.mxu0 0.0
        %1818 = vmatpush1.msra.mxu0 %v1797
        %1819 = vmatprep.subr.mxu0 0.0
        %1820 = vmatpush1.msra.mxu0 %v1798
        %1821 = vmatprep.subr.mxu0 0.0
        %1822 = vmatpush1.msra.mxu0 %v1799
        %1823 = vmatprep.subr.mxu0 0.0
        %1824 = vmatpush1.msra.mxu0 %v1800
        %1825 = vmatprep.subr.mxu0 0.0
        %1826 = vmatpush1.msra.mxu0 %v1801
        %1827 = vmatprep.subr.mxu0 0.0
        %1828 = vmatpush1.msra.mxu0 %v1802
        %1829 = vmatprep.subr.mxu0 0.0
        %1830 = vmatpush1.msra.mxu0 %v1803
        %1831 = vmatprep.subr.mxu0 0.0
        %1832 = vmatpush1.msra.mxu0 %v1804
        %1833 = vmatprep.subr.mxu0 0.0
        %1834 = vmatpush1.msra.mxu0 %v1805
        %1835 = vmatprep.subr.mxu0 0.0
        %1836 = vmatpush1.msra.mxu0 %v1806
        %1837 = vmatprep.subr.mxu0 0.0
        %1838 = vmatpush1.msra.mxu0 %v1807
        %1839 = vmatprep.subr.mxu0 0.0
        %1840 = vmatpush1.msra.mxu0 %v1808
        %1841 = vmatprep.subr.mxu0 0.0
        %1842 = vmatpush1.msra.mxu0 0.0
        %1843 = vmatprep.subr.mxu0 0.0
        %1844 = vmatpush1.msra.mxu0 0.0
        %1845 = vmatprep.subr.mxu0 0.0
        %1846 = vmatpush1.msra.mxu0 0.0
        %1847 = vmatprep.subr.mxu0 0.0
        %1848 = vmatpush1.msra.mxu0 0.0
        %1849 = vmatprep.subr.mxu0 0.0
        %1850 = vmatpush1.msra.mxu0 0.0
        %1851 = vmatprep.subr.mxu0 0.0
        %1852 = vmatpush1.msra.mxu0 0.0
        %1853 = vmatprep.subr.mxu0 0.0
        %1854 = vmatpush1.msra.mxu0 0.0
        %1855 = vmatprep.subr.mxu0 0.0
        %1856 = vmatpush1.msra.mxu0 0.0
        %1857 = vmatprep.subr.mxu0 0.0
        %1858 = vmatpush1.msra.mxu0 0.0
        %1859 = vmatprep.subr.mxu0 0.0
        %1860 = vmatpush1.msra.mxu0 0.0
        %1861 = vmatprep.subr.mxu0 0.0
        %1862 = vmatpush1.msra.mxu0 0.0
        %1863 = vmatprep.subr.mxu0 0.0
        %1864 = vmatpush1.msra.mxu0 0.0
        %1865 = vmatprep.subr.mxu0 0.0
        %1866 = vmatpush1.msra.mxu0 0.0
        %1867 = vmatprep.subr.mxu0 0.0
        %1868 = vmatpush1.msra.mxu0 0.0
        %1869 = vmatprep.subr.mxu0 0.0
        %1870 = vmatpush1.msra.mxu0 0.0
        %1871 = vmatprep.subr.mxu0 0.0
        %1872 = vmatpush1.msra.mxu0 0.0
        %1873 = vmatprep.mubr.f32.mxu0 0.0
        %1874 = vmatmul.mubr.f32.gmra.mrb[0].mxu0 %v333
        %v1875 = vpop.f32.mrb[0].mxu0
        %v1876 = vadd.f32 0.0, %v1875
        %v1877 = vpop.f32.mrb[0].mxu0
        %1878 = vdwg.mxu0
        %v1879 = vmax.f32 %v1688, %v1876
        %v1880 = vld [vmem:[%s3] sm:$0xf]
        %v1881 = vld [vmem:[%s4] sm:$0xf]
        %v1882 = vpack.c.bf16 %v1879, %v1879
        %vm1883 = vcmask 64512
        %v1885 = vsel %vm1883, %v1881, 0
        %vm1887 = vcmask 1043456
        %v1889 = vsel %vm1887, %v1882, 0
        %1891 = vmatprep.subr.bf16.mxu0 0
        %1892 = vmatpush1.bf16.msra.mxu0 %v1889
        %1893 = vmatprep.subr.bf16.mxu0 0
        %1894 = vmatpush1.bf16.msra.mxu0 0
        %1895 = vmatprep.subr.bf16.mxu0 0
        %1896 = vmatpush1.bf16.msra.mxu0 0
        %1897 = vmatprep.subr.bf16.mxu0 0
        %1898 = vmatpush1.bf16.msra.mxu0 0
        %1899 = vmatprep.subr.bf16.mxu0 0
        %1900 = vmatpush1.bf16.msra.mxu0 0
        %1901 = vmatprep.subr.bf16.mxu0 0
        %1902 = vmatpush1.bf16.msra.mxu0 0
        %1903 = vmatprep.subr.bf16.mxu0 0
        %1904 = vmatpush1.bf16.msra.mxu0 0
        %1905 = vmatprep.subr.bf16.mxu0 0
        %1906 = vmatpush1.bf16.msra.mxu0 0
        %1907 = vmatprep.subr.bf16.mxu0 0
        %1908 = vmatpush1.bf16.msra.mxu0 0
        %1909 = vmatprep.subr.bf16.mxu0 0
        %1910 = vmatpush1.bf16.msra.mxu0 0
        %1911 = vmatprep.subr.bf16.mxu0 0
        %1912 = vmatpush1.bf16.msra.mxu0 0
        %1913 = vmatprep.subr.bf16.mxu0 0
        %1914 = vmatpush1.bf16.msra.mxu0 0
        %1915 = vmatprep.subr.bf16.mxu0 0
        %1916 = vmatpush1.bf16.msra.mxu0 0
        %1917 = vmatprep.subr.bf16.mxu0 0
        %1918 = vmatpush1.bf16.msra.mxu0 0
        %1919 = vmatprep.subr.bf16.mxu0 0
        %1920 = vmatpush1.bf16.msra.mxu0 0
        %1921 = vmatprep.subr.bf16.mxu0 0
        %1922 = vmatpush1.bf16.msra.mxu0 0
        %1923 = vmatprep.mubr.bf16.mxu0 0
        %1924 = vmatmul.mubr.bf16.gmra.mrb[0].mxu0 %v1885
        %v1925 = vpop.f32.mrb[0].mxu0
        %v1926 = vadd.f32 0.0, %v1925
        %v1927 = vpop.f32.mrb[0].mxu0
        %v1928 = vpop.f32.mrb[0].mxu0
        %v1929 = vpop.f32.mrb[0].mxu0
        %1930 = vdwg.mxu0
        %v1932 = vsel %vm1883, %v1880, 0
        %v1935 = vsel %vm1887, %v332, 0
        %1937 = vmatprep.subr.bf16.mxu0 0
        %1938 = vmatpush1.bf16.msra.mxu0 %v1935
        %1939 = vmatprep.subr.bf16.mxu0 0
        %1940 = vmatpush1.bf16.msra.mxu0 0
        %1941 = vmatprep.subr.bf16.mxu0 0
        %1942 = vmatpush1.bf16.msra.mxu0 0
        %1943 = vmatprep.subr.bf16.mxu0 0
        %1944 = vmatpush1.bf16.msra.mxu0 0
        %1945 = vmatprep.subr.bf16.mxu0 0
        %1946 = vmatpush1.bf16.msra.mxu0 0
        %1947 = vmatprep.subr.bf16.mxu0 0
        %1948 = vmatpush1.bf16.msra.mxu0 0
        %1949 = vmatprep.subr.bf16.mxu0 0
        %1950 = vmatpush1.bf16.msra.mxu0 0
        %1951 = vmatprep.subr.bf16.mxu0 0
        %1952 = vmatpush1.bf16.msra.mxu0 0
        %1953 = vmatprep.subr.bf16.mxu0 0
        %1954 = vmatpush1.bf16.msra.mxu0 0
        %1955 = vmatprep.subr.bf16.mxu0 0
        %1956 = vmatpush1.bf16.msra.mxu0 0
        %1957 = vmatprep.subr.bf16.mxu0 0
        %1958 = vmatpush1.bf16.msra.mxu0 0
        %1959 = vmatprep.subr.bf16.mxu0 0
        %1960 = vmatpush1.bf16.msra.mxu0 0
        %1961 = vmatprep.subr.bf16.mxu0 0
        %1962 = vmatpush1.bf16.msra.mxu0 0
        %1963 = vmatprep.subr.bf16.mxu0 0
        %1964 = vmatpush1.bf16.msra.mxu0 0
        %1965 = vmatprep.subr.bf16.mxu0 0
        %1966 = vmatpush1.bf16.msra.mxu0 0
        %1967 = vmatprep.subr.bf16.mxu0 0
        %1968 = vmatpush1.bf16.msra.mxu0 0
        %1969 = vmatprep.mubr.bf16.mxu0 0
        %1970 = vmatmul.mubr.bf16.gmra.mrb[0].mxu0 %v1932
        %v1971 = vpop.f32.mrb[0].mxu0
        %v1972 = vadd.f32 %v1926, %v1971
        %v1973 = vpop.f32.mrb[0].mxu0
        %v1974 = vpop.f32.mrb[0].mxu0
        %v1975 = vpop.f32.mrb[0].mxu0
        %1976 = vdwg.mxu0
        %v1977 = vmax.f32 %v1972, 0.0
        %1978 = vst [vmem:[%s330] sm:$0xff] %v1977
        %s1979 = sand.u32 %s171, 1
        %s1980 = scalar_lea.sflag [#allocation4], %s1979
        %s1981 = sand.u32 %s171, 1
        %s1982 = smul.addr %s1981, 8
        %s1983 = scalar_lea.vmem [#allocation8], %s1982
        // Predicated region
        $region53: #{tpu_custom_call.1} parent=39 // pred_check
          %p1984 = pneg %p181
        $region54: #{tpu_custom_call.1} parent=39 // pred_check_branch
          %1986 = sbr.rel (%p1984) target = $region56
        $region55: #{tpu_custom_call.1} parent=39 // pred_region
          %s1988 = ssub.s32 128, 128
          %1989 = vsyncadd %s1980, %s1988
          %s1990 = sadd.s32 %s30, %s29
          %s1991 = smul.addr %s1990, 128
          %s1992 = scalar_lea.hbm %s5, %s1991
          %s1994 = sshll.u32 %s1983, 4
          %s1995 = int_to_ptr.vmem [resolvable:$true] %s1994
          %1997 = dma.vmem_to_hbm [thread:$0]  %s1995, 128, %s1992, %s1980
        $region56: #{tpu_custom_call.1} parent=39 // pred_fallthru
          _
      $region40: #{tpu_custom_call.1} parent=5 // pred_fallthru
        _
      %p1998 = scmp.le.s32.totalorder 2, %s20
      // Predicated region
      $region57: #{tpu_custom_call.1} parent=5 // pred_check
        %p1999 = pneg %p1998
      $region58: #{tpu_custom_call.1} parent=5 // pred_check_branch
        %2001 = sbr.rel (%p1999) target = $region60
      $region59: #{tpu_custom_call.1} parent=5 // pred_region
        %s2002 = ssub.s32 %s20, 2
        // Predicated region
        $region61: #{tpu_custom_call.1} parent=59 // pred_check
          %p2003 = pneg %p187
        $region62: #{tpu_custom_call.1} parent=59 // pred_check_branch
          %2005 = sbr.rel (%p2003) target = $region64
        $region63: #{tpu_custom_call.1} parent=59 // pred_region
          %s2006 = sand.u32 %s172, 1
          %s2007 = scalar_lea.sflag [#allocation4], %s2006
          %s2008 = sand.u32 %s172, 1
          %s2009 = smul.addr %s2008, 8
          %s2010 = scalar_lea.vmem [#allocation8], %s2009
          %2011 = dma.done %s2007, 128
        $region64: #{tpu_custom_call.1} parent=59 // pred_fallthru
          _
      $region60: #{tpu_custom_call.1} parent=5 // pred_fallthru
        _
    $region6: #{tpu_custom_call.1} parent=1 // loop_footer
      %s24 = sadd.s32 1, %s20
    $region7: #{tpu_custom_call.1} parent=1 // loop_footer_branch
      %19 = sbr.rel target = $region3
    $region8: #{tpu_custom_call.1} parent=1 // loop_exit
      _
    %2012 = vsyncpa [#allocation3], 1
    %s2013 = scalar_lea.sflag [#allocation3], 1
    %2014 = vsyncpa %s2013, 1
    %2015 = vsyncpa [#allocation6], 1
    %s2016 = scalar_lea.sflag [#allocation6], 1
    %2017 = vsyncpa %s2016, 1
    %2018 = vsyncpa [#allocation4], 1
    %s2019 = scalar_lea.sflag [#allocation4], 1
    %2020 = vsyncpa %s2019, 1

</llo_original>
